<compile_context>
chip_gen: v5e
topology: v5e:2x2
jax: 0.10.0
libtpu: 0.0.40
codegen_flags: <defaults>
</compile_context>

<pallas_src>
import functools
import math

import numpy as np
import jax
import jax.numpy as jnp
from jax import lax
from jax.experimental import pallas as pl
from jax.experimental.pallas import tpu as pltpu

BN_EPS = 1e-5
LEAKY_SLOPE = 0.01


def _round_up(x, m):
    return (x + m - 1) // m * m


# ----------------------------------------------------------------------------
# Pallas kernel: 2x bilinear upsample + 3x3 conv + BN(eval) + LeakyReLU
# ----------------------------------------------------------------------------
def _decoder_block_kernel(x_ref, w_ref, scale_ref, shift_ref, o_ref, *, H, W, HW):
    """One batch-group.

    x_ref:     (1, R, Cin_p)      R = samples_in_group * H * W, channels-last, bf16
    w_ref:     (9, Cin_p, Cout_p) conv taps (t = ky*3 + kx), bf16
    scale_ref: (1, Cout_p)        folded BN scale (gamma / sqrt(var+eps)), f32
    shift_ref: (1, Cout_p)        folded conv-bias + BN shift, f32
    o_ref:     (1, 4*R, Cout_p)   rows = [parity(0,0) | (0,1) | (1,0) | (1,1)],
                                  parity (s, t) holds output pixels (2a+s, 2j+t).
    """
    x = x_ref[0].astype(jnp.float32)                     # (R, Cin_p)
    R = x.shape[0]

    # per-row spatial coordinates (row = n_local*HW + a*W + j)
    r = lax.broadcasted_iota(jnp.int32, (R, 1), 0)
    j = r % W
    ri = r % HW
    is_j0 = j == 0
    is_jL = j == (W - 1)
    is_a0 = ri < W
    is_aL = ri >= (HW - W)

    def shift_a(z, up, clamp):
        # up=True : value at (a-1, j);  up=False : value at (a+1, j)
        if up:
            sh = jnp.concatenate([z[:W], z[:-W]], axis=0)
            edge = is_a0
        else:
            sh = jnp.concatenate([z[W:], z[-W:]], axis=0)
            edge = is_aL
        fill = z if clamp else jnp.zeros_like(z)
        return jnp.where(edge, fill, sh)

    def shift_j(z, left, clamp):
        # left=True: value at (a, j-1); left=False: value at (a, j+1)
        if left:
            sh = jnp.concatenate([z[:1], z[:-1]], axis=0)
            edge = is_j0
        else:
            sh = jnp.concatenate([z[1:], z[-1:]], axis=0)
            edge = is_jL
        fill = z if clamp else jnp.zeros_like(z)
        return jnp.where(edge, fill, sh)

    # --- 2x bilinear upsample (align_corners=False), parity decomposed -------
    # u[s][t][a, j] == upsampled[2a+s, 2j+t]
    h0 = 0.25 * shift_a(x, True, True) + 0.75 * x        # even output rows
    h1 = 0.75 * x + 0.25 * shift_a(x, False, True)       # odd output rows
    u = [[0.25 * shift_j(h, True, True) + 0.75 * h,
          0.75 * h + 0.25 * shift_j(h, False, True)] for h in (h0, h1)]

    # --- 16 zero-padded conv-source slabs, indexed by (hi, wi) in 0..3 -------
    #  hi=0: row (a-1) of H-parity 1, zero at a=0
    #  hi=1: H-parity 0           hi=2: H-parity 1
    #  hi=3: row (a+1) of H-parity 0, zero at a=H-1           (same along W)
    par = (1, 0, 1, 0)
    slab = {}
    for hi in range(4):
        for wi in range(4):
            z = u[par[hi]][par[wi]]
            if hi == 0:
                z = shift_a(z, True, False)
            elif hi == 3:
                z = shift_a(z, False, False)
            if wi == 0:
                z = shift_j(z, True, False)
            elif wi == 3:
                z = shift_j(z, False, False)
            slab[(hi, wi)] = z.astype(jnp.bfloat16)

    # --- 3x3 conv: output parity (s, t), tap (ky, kx) reads slab[(s+ky, t+kx)].
    # Stack the 4 output parities along rows so each tap is ONE big MXU matmul.
    cout_p = w_ref.shape[2]
    acc = jnp.zeros((4 * R, cout_p), jnp.float32)
    for ky in range(3):
        for kx in range(3):
            stacked = jnp.concatenate(
                [slab[(ky, kx)], slab[(ky, kx + 1)],
                 slab[(ky + 1, kx)], slab[(ky + 1, kx + 1)]], axis=0)
            acc = acc + jnp.dot(stacked, w_ref[ky * 3 + kx],
                                preferred_element_type=jnp.float32)

    y = acc * scale_ref[...] + shift_ref[...]            # conv bias + BN(eval) folded
    y = jnp.where(y >= 0.0, y, LEAKY_SLOPE * y)          # LeakyReLU(0.01)
    # TODO(synk): Dropout2d(0.3) is identity in eval mode; training-mode channel
    # dropout (pltpu.prng_*) is not implemented here.
    o_ref[0] = y.astype(o_ref.dtype)


# ----------------------------------------------------------------------------
# wrapper: one decoder block
# ----------------------------------------------------------------------------
def _run_block(x_nchw, params):
    """One decoder block: (N, Cin, H, W) -> (N, Cout, 2H, 2W)."""
    N, Cin, H, W = x_nchw.shape
    conv_w = params["conv_w"]                            # (Cout, Cin, 3, 3)
    Cout = conv_w.shape[0]
    HW = H * W
    Cin_p = _round_up(Cin, 128)
    Cout_p = _round_up(Cout, 128)

    # fold conv bias + BatchNorm (eval) into a per-channel scale / shift
    inv_std = 1.0 / jnp.sqrt(params["bn_var"] + BN_EPS)
    scale_vec = params["bn_gamma"] * inv_std
    shift_vec = params["bn_beta"] + (params["conv_b"] - params["bn_mean"]) * scale_vec
    scale = jnp.pad(scale_vec, (0, Cout_p - Cout)).reshape(1, Cout_p).astype(jnp.float32)
    shift = jnp.pad(shift_vec, (0, Cout_p - Cout)).reshape(1, Cout_p).astype(jnp.float32)

    # conv weights -> 9 taps of (Cin_p, Cout_p), bf16 (t = ky*3 + kx)
    w9 = jnp.transpose(conv_w, (2, 3, 1, 0)).reshape(9, Cin, Cout)
    w9 = jnp.pad(w9, ((0, 0), (0, Cin_p - Cin), (0, Cout_p - Cout))).astype(jnp.bfloat16)

    # activations: NCHW -> channels-last rows, channels zero-padded to 128 lanes
    x_rows = jnp.transpose(x_nchw, (0, 2, 3, 1)).reshape(N, HW, Cin)
    x_rows = jnp.pad(x_rows, ((0, 0), (0, 0), (0, Cin_p - Cin))).astype(jnp.bfloat16)

    # fold the (small) batch into the row dimension of a single grid step
    # TODO(synk): for production-size blocks add batch/spatial tiling grid axes.
    g = N if N * HW <= 2048 else 1
    G = N // g
    R = g * HW
    x_grp = x_rows.reshape(G, R, Cin_p)

    kernel = functools.partial(_decoder_block_kernel, H=H, W=W, HW=HW)
    out = pl.pallas_call(
        kernel,
        out_shape=jax.ShapeDtypeStruct((G, 4 * R, Cout_p), jnp.float32),
        grid_spec=pltpu.PrefetchScalarGridSpec(
            num_scalar_prefetch=0,
            grid=(G,),
            in_specs=[
                pl.BlockSpec((1, R, Cin_p), lambda b: (b, 0, 0)),
                pl.BlockSpec((9, Cin_p, Cout_p), lambda b: (0, 0, 0)),
                pl.BlockSpec((1, Cout_p), lambda b: (0, 0)),
                pl.BlockSpec((1, Cout_p), lambda b: (0, 0)),
            ],
            out_specs=pl.BlockSpec((1, 4 * R, Cout_p), lambda b: (b, 0, 0)),
        ),
        compiler_params=pltpu.CompilerParams(
            dimension_semantics=("parallel",),
            vmem_limit_bytes=64 * 1024 * 1024,
        ),
    )(x_grp, w9, scale, shift)

    # rows are ordered (s, t, n_local, a, j); output pixel is (2a+s, 2j+t)
    y = out.reshape(G, 2, 2, g, H, W, Cout_p)
    y = jnp.transpose(y, (0, 3, 6, 4, 1, 5, 2)).reshape(N, Cout_p, 2 * H, 2 * W)
    return y[:, :Cout]


def upsample_decoder_forward(x, skip_features, params_list):
    """Mirrors UpsampleDecoder.forward. x, skips: NCHW. Returns list of NCHW."""
    outputs = []
    n = len(skip_features)
    for i, p in enumerate(params_list):
        skip = skip_features[n - 1 - i]
        x = jnp.concatenate([x, skip], axis=1)           # cat on channel dim
        x = _run_block(x, p)
        outputs.append(x)
    return outputs


# ----------------------------------------------------------------------------
# deterministic parameter init (shapes from the module's __init__)
# ----------------------------------------------------------------------------
def init_params(key, embed_dims):
    params = []
    n = len(embed_dims)
    for i in range(n - 1):
        cin = embed_dims[n - i - 1] * 2
        cout = embed_dims[n - i - 2]
        key, kw, kb, kg, kbt, km, kv = jax.random.split(key, 7)
        bound = 1.0 / math.sqrt(cin * 9)
        params.append(dict(
            conv_w=jax.random.uniform(kw, (cout, cin, 3, 3), jnp.float32, -bound, bound),
            conv_b=jax.random.uniform(kb, (cout,), jnp.float32, -bound, bound),
            bn_gamma=1.0 + 0.1 * jax.random.normal(kg, (cout,), jnp.float32),
            bn_beta=0.1 * jax.random.normal(kbt, (cout,), jnp.float32),
            bn_mean=0.1 * jax.random.normal(km, (cout,), jnp.float32),
            bn_var=1.0 + 0.1 * jax.random.uniform(kv, (cout,), jnp.float32),
        ))
    return params


# ----------------------------------------------------------------------------
# pure-JAX reference (sanity check)
# ----------------------------------------------------------------------------
def _ref_upsample2x(x):
    N, C, H, W = x.shape

    def idx(sz):
        p = np.arange(2 * sz, dtype=np.float64)
        src = np.maximum((p + 0.5) * 0.5 - 0.5, 0.0)
        i0 = np.minimum(np.floor(src).astype(np.int64), sz - 1)
        i1 = np.minimum(i0 + 1, sz - 1)
        f = jnp.asarray((src - np.floor(src)).astype(np.float32))
        return i0, i1, f

    i0h, i1h, fh = idx(H)
    i0w, i1w, fw = idx(W)
    xh = x[:, :, i0h, :] * (1 - fh)[None, None, :, None] + x[:, :, i1h, :] * fh[None, None, :, None]
    return xh[:, :, :, i0w] * (1 - fw) + xh[:, :, :, i1w] * fw


def _ref_block(x, p):
    xu = _ref_upsample2x(x)
    y = lax.conv_general_dilated(xu, p["conv_w"], (1, 1), "SAME",
                                 dimension_numbers=("NCHW", "OIHW", "NCHW"))
    y = y + p["conv_b"][None, :, None, None]
    y = (y - p["bn_mean"][None, :, None, None]) / jnp.sqrt(p["bn_var"] + BN_EPS)[None, :, None, None]
    y = y * p["bn_gamma"][None, :, None, None] + p["bn_beta"][None, :, None, None]
    return jnp.where(y >= 0, y, LEAKY_SLOPE * y)


def ref_forward(x, skips, params_list):
    outs = []
    n = len(skips)
    for i, p in enumerate(params_list):
        x = jnp.concatenate([x, skips[n - 1 - i]], axis=1)
        x = _ref_block(x, p)
        outs.append(x)
    return outs


# ----------------------------------------------------------------------------
if __name__ == "__main__":
    # small variant of the default embed_dims=[32, 64, 160, 256]
    embed_dims = [8, 16, 32, 64]
    N = 2
    base = 16                                   # spatial size of the H/4 feature map

    key = jax.random.PRNGKey(0)
    key, k0, k1, k2, k3, kx = jax.random.split(key, 6)
    skip_keys = [k0, k1, k2, k3]
    skip_features = [
        jax.random.normal(skip_keys[j],
                          (N, embed_dims[j], base // (2 ** j), base // (2 ** j)),
                          jnp.float32)
        for j in range(4)
    ]                                            # [H/4, H/8, H/16, H/32]
    x = jax.random.normal(kx, (N, embed_dims[-1], base // 8, base // 8), jnp.float32)

    params = init_params(key, embed_dims)

    outs = upsample_decoder_forward(x, skip_features, params)
    outs = jax.block_until_ready(outs)

    refs = ref_forward(x, skip_features, params)
    expected_shapes = [(N, 32, 4, 4), (N, 16, 8, 8), (N, 8, 16, 16)]
    for o, r, es in zip(outs, refs, expected_shapes):
        assert o.shape == es, (o.shape, es)
        np.testing.assert_allclose(np.asarray(o), np.asarray(r), rtol=3e-2, atol=3e-2)

    print("KERNEL_OK")
</pallas_src>

<mosaic_0001>
module attributes {stable_mosaic.version = 11 : i64} {
  func.func @_decoder_block_kernel(%arg0: i32, %arg1: memref<1x8x128xbf16, #tpu.memory_space<vmem>>, %arg2: memref<9x128x128xbf16, #tpu.memory_space<vmem>>, %arg3: memref<1x128xf32, #tpu.memory_space<vmem>>, %arg4: memref<1x128xf32, #tpu.memory_space<vmem>>, %arg5: memref<1x32x128xf32, #tpu.memory_space<vmem>>) attributes {dimension_semantics = [#tpu.dimension_semantics<parallel>], iteration_bounds = array<i64: 1>, scalar_prefetch = 0 : i64, scratch_operands = 0 : i64, tpu.core_type = #tpu.core_type<tc>, window_params = [{transform_indices = @transform_0, window_bounds = array<i64: 1, 8, 128>}, {pipeline_mode = #tpu.pipeline_mode<synchronous>, transform_indices = @transform_1, window_bounds = array<i64: 9, 128, 128>}, {pipeline_mode = #tpu.pipeline_mode<synchronous>, transform_indices = @transform_2, window_bounds = array<i64: 1, 128>}, {pipeline_mode = #tpu.pipeline_mode<synchronous>, transform_indices = @transform_3, window_bounds = array<i64: 1, 128>}, {transform_indices = @transform_4, window_bounds = array<i64: 1, 32, 128>}]} {
    %c0 = arith.constant 0 : index
    %c0_0 = arith.constant 0 : index
    %c0_1 = arith.constant 0 : index
    %0 = vector.load %arg1[%c0, %c0_0, %c0_1] : memref<1x8x128xbf16, #tpu.memory_space<vmem>>, vector<1x8x128xbf16>
    %1 = vector.shape_cast %0 : vector<1x8x128xbf16> to vector<8x128xbf16>
    %2 = arith.extf %1 : vector<8x128xbf16> to vector<8x128xf32>
    %3 = tpu.iota {dimensions = array<i32: 0>} : vector<8x1xi32>
    %c2_i32 = arith.constant 2 : i32
    %c0_i32 = arith.constant 0 : i32
    %4 = arith.cmpi eq, %c2_i32, %c0_i32 : i32
    %c1_i32 = arith.constant 1 : i32
    %5 = arith.select %4, %c1_i32, %c2_i32 : i32
    %6 = vector.broadcast %5 : i32 to vector<8x1xi32>
    %7 = arith.remsi %3, %6 : vector<8x1xi32>
    %c0_i32_2 = arith.constant 0 : i32
    %8 = vector.broadcast %c0_i32_2 : i32 to vector<8x1xi32>
    %9 = arith.cmpi ne, %7, %8 : vector<8x1xi32>
    %c0_i32_3 = arith.constant 0 : i32
    %10 = vector.broadcast %c0_i32_3 : i32 to vector<8x1xi32>
    %11 = arith.cmpi slt, %7, %10 : vector<8x1xi32>
    %c0_i32_4 = arith.constant 0 : i32
    %12 = arith.cmpi slt, %5, %c0_i32_4 : i32
    %13 = vector.broadcast %12 : i1 to vector<8x1xi1>
    %14 = vector.broadcast %13 : vector<8x1xi1> to vector<8x1xi1>
    %15 = arith.xori %11, %14 : vector<8x1xi1>
    %16 = arith.andi %15, %9 : vector<8x1xi1>
    %17 = vector.broadcast %5 : i32 to vector<8x1xi32>
    %18 = arith.addi %7, %17 : vector<8x1xi32>
    %19 = arith.select %16, %18, %7 : vector<8x1xi1>, vector<8x1xi32>
    %c4_i32 = arith.constant 4 : i32
    %c0_i32_5 = arith.constant 0 : i32
    %20 = arith.cmpi eq, %c4_i32, %c0_i32_5 : i32
    %c1_i32_6 = arith.constant 1 : i32
    %21 = arith.select %20, %c1_i32_6, %c4_i32 : i32
    %22 = vector.broadcast %21 : i32 to vector<8x1xi32>
    %23 = arith.remsi %3, %22 : vector<8x1xi32>
    %c0_i32_7 = arith.constant 0 : i32
    %24 = vector.broadcast %c0_i32_7 : i32 to vector<8x1xi32>
    %25 = arith.cmpi ne, %23, %24 : vector<8x1xi32>
    %c0_i32_8 = arith.constant 0 : i32
    %26 = vector.broadcast %c0_i32_8 : i32 to vector<8x1xi32>
    %27 = arith.cmpi slt, %23, %26 : vector<8x1xi32>
    %c0_i32_9 = arith.constant 0 : i32
    %28 = arith.cmpi slt, %21, %c0_i32_9 : i32
    %29 = vector.broadcast %28 : i1 to vector<8x1xi1>
    %30 = vector.broadcast %29 : vector<8x1xi1> to vector<8x1xi1>
    %31 = arith.xori %27, %30 : vector<8x1xi1>
    %32 = arith.andi %31, %25 : vector<8x1xi1>
    %33 = vector.broadcast %21 : i32 to vector<8x1xi32>
    %34 = arith.addi %23, %33 : vector<8x1xi32>
    %35 = arith.select %32, %34, %23 : vector<8x1xi1>, vector<8x1xi32>
    %c0_i32_10 = arith.constant 0 : i32
    %36 = vector.broadcast %c0_i32_10 : i32 to vector<8x1xi32>
    %37 = arith.cmpi eq, %19, %36 : vector<8x1xi32>
    %c1_i32_11 = arith.constant 1 : i32
    %38 = vector.broadcast %c1_i32_11 : i32 to vector<8x1xi32>
    %39 = arith.cmpi eq, %19, %38 : vector<8x1xi32>
    %c2_i32_12 = arith.constant 2 : i32
    %40 = vector.broadcast %c2_i32_12 : i32 to vector<8x1xi32>
    %41 = arith.cmpi slt, %35, %40 : vector<8x1xi32>
    %c2_i32_13 = arith.constant 2 : i32
    %42 = vector.broadcast %c2_i32_13 : i32 to vector<8x1xi32>
    %43 = arith.cmpi sge, %35, %42 : vector<8x1xi32>
    %44 = vector.extract_strided_slice %2 {offsets = [0, 0], sizes = [2, 128], strides = [1, 1]} : vector<8x128xf32> to vector<2x128xf32>
    %45 = vector.extract_strided_slice %2 {offsets = [0, 0], sizes = [6, 128], strides = [1, 1]} : vector<8x128xf32> to vector<6x128xf32>
    %46 = tpu.concatenate %44, %45 in 0 : vector<2x128xf32>, vector<6x128xf32> -> vector<8x128xf32>
    %47 = vector.shape_cast %41 : vector<8x1xi1> to vector<8x1xi1>
    %48 = vector.broadcast %47 : vector<8x1xi1> to vector<8x128xi1>
    %49 = arith.select %48, %2, %46 : vector<8x128xi1>, vector<8x128xf32>
    %cst = arith.constant 2.500000e-01 : f32
    %50 = vector.broadcast %cst : f32 to vector<8x128xf32>
    %51 = arith.mulf %50, %49 : vector<8x128xf32>
    %cst_14 = arith.constant 7.500000e-01 : f32
    %52 = vector.broadcast %cst_14 : f32 to vector<8x128xf32>
    %53 = arith.mulf %52, %2 : vector<8x128xf32>
    %54 = arith.addf %51, %53 : vector<8x128xf32>
    %cst_15 = arith.constant 7.500000e-01 : f32
    %55 = vector.broadcast %cst_15 : f32 to vector<8x128xf32>
    %56 = arith.mulf %55, %2 : vector<8x128xf32>
    %57 = vector.extract_strided_slice %2 {offsets = [2, 0], sizes = [6, 128], strides = [1, 1]} : vector<8x128xf32> to vector<6x128xf32>
    %58 = vector.extract_strided_slice %2 {offsets = [6, 0], sizes = [2, 128], strides = [1, 1]} : vector<8x128xf32> to vector<2x128xf32>
    %59 = tpu.concatenate %57, %58 in 0 : vector<6x128xf32>, vector<2x128xf32> -> vector<8x128xf32>
    %60 = vector.shape_cast %43 : vector<8x1xi1> to vector<8x1xi1>
    %61 = vector.broadcast %60 : vector<8x1xi1> to vector<8x128xi1>
    %62 = arith.select %61, %2, %59 : vector<8x128xi1>, vector<8x128xf32>
    %cst_16 = arith.constant 2.500000e-01 : f32
    %63 = vector.broadcast %cst_16 : f32 to vector<8x128xf32>
    %64 = arith.mulf %63, %62 : vector<8x128xf32>
    %65 = arith.addf %56, %64 : vector<8x128xf32>
    %66 = vector.extract_strided_slice %54 {offsets = [0, 0], sizes = [1, 128], strides = [1, 1]} : vector<8x128xf32> to vector<1x128xf32>
    %67 = vector.extract_strided_slice %54 {offsets = [0, 0], sizes = [7, 128], strides = [1, 1]} : vector<8x128xf32> to vector<7x128xf32>
    %68 = tpu.concatenate %66, %67 in 0 : vector<1x128xf32>, vector<7x128xf32> -> vector<8x128xf32>
    %69 = vector.shape_cast %37 : vector<8x1xi1> to vector<8x1xi1>
    %70 = vector.broadcast %69 : vector<8x1xi1> to vector<8x128xi1>
    %71 = arith.select %70, %54, %68 : vector<8x128xi1>, vector<8x128xf32>
    %cst_17 = arith.constant 2.500000e-01 : f32
    %72 = vector.broadcast %cst_17 : f32 to vector<8x128xf32>
    %73 = arith.mulf %72, %71 : vector<8x128xf32>
    %cst_18 = arith.constant 7.500000e-01 : f32
    %74 = vector.broadcast %cst_18 : f32 to vector<8x128xf32>
    %75 = arith.mulf %74, %54 : vector<8x128xf32>
    %76 = arith.addf %73, %75 : vector<8x128xf32>
    %cst_19 = arith.constant 7.500000e-01 : f32
    %77 = vector.broadcast %cst_19 : f32 to vector<8x128xf32>
    %78 = arith.mulf %77, %54 : vector<8x128xf32>
    %79 = vector.extract_strided_slice %54 {offsets = [1, 0], sizes = [7, 128], strides = [1, 1]} : vector<8x128xf32> to vector<7x128xf32>
    %80 = vector.extract_strided_slice %54 {offsets = [7, 0], sizes = [1, 128], strides = [1, 1]} : vector<8x128xf32> to vector<1x128xf32>
    %81 = tpu.concatenate %79, %80 in 0 : vector<7x128xf32>, vector<1x128xf32> -> vector<8x128xf32>
    %82 = vector.shape_cast %39 : vector<8x1xi1> to vector<8x1xi1>
    %83 = vector.broadcast %82 : vector<8x1xi1> to vector<8x128xi1>
    %84 = arith.select %83, %54, %81 : vector<8x128xi1>, vector<8x128xf32>
    %cst_20 = arith.constant 2.500000e-01 : f32
    %85 = vector.broadcast %cst_20 : f32 to vector<8x128xf32>
    %86 = arith.mulf %85, %84 : vector<8x128xf32>
    %87 = arith.addf %78, %86 : vector<8x128xf32>
    %88 = vector.extract_strided_slice %65 {offsets = [0, 0], sizes = [1, 128], strides = [1, 1]} : vector<8x128xf32> to vector<1x128xf32>
    %89 = vector.extract_strided_slice %65 {offsets = [0, 0], sizes = [7, 128], strides = [1, 1]} : vector<8x128xf32> to vector<7x128xf32>
    %90 = tpu.concatenate %88, %89 in 0 : vector<1x128xf32>, vector<7x128xf32> -> vector<8x128xf32>
    %91 = vector.shape_cast %37 : vector<8x1xi1> to vector<8x1xi1>
    %92 = vector.broadcast %91 : vector<8x1xi1> to vector<8x128xi1>
    %93 = arith.select %92, %65, %90 : vector<8x128xi1>, vector<8x128xf32>
    %cst_21 = arith.constant 2.500000e-01 : f32
    %94 = vector.broadcast %cst_21 : f32 to vector<8x128xf32>
    %95 = arith.mulf %94, %93 : vector<8x128xf32>
    %cst_22 = arith.constant 7.500000e-01 : f32
    %96 = vector.broadcast %cst_22 : f32 to vector<8x128xf32>
    %97 = arith.mulf %96, %65 : vector<8x128xf32>
    %98 = arith.addf %95, %97 : vector<8x128xf32>
    %cst_23 = arith.constant 7.500000e-01 : f32
    %99 = vector.broadcast %cst_23 : f32 to vector<8x128xf32>
    %100 = arith.mulf %99, %65 : vector<8x128xf32>
    %101 = vector.extract_strided_slice %65 {offsets = [1, 0], sizes = [7, 128], strides = [1, 1]} : vector<8x128xf32> to vector<7x128xf32>
    %102 = vector.extract_strided_slice %65 {offsets = [7, 0], sizes = [1, 128], strides = [1, 1]} : vector<8x128xf32> to vector<1x128xf32>
    %103 = tpu.concatenate %101, %102 in 0 : vector<7x128xf32>, vector<1x128xf32> -> vector<8x128xf32>
    %104 = vector.shape_cast %39 : vector<8x1xi1> to vector<8x1xi1>
    %105 = vector.broadcast %104 : vector<8x1xi1> to vector<8x128xi1>
    %106 = arith.select %105, %65, %103 : vector<8x128xi1>, vector<8x128xf32>
    %cst_24 = arith.constant 2.500000e-01 : f32
    %107 = vector.broadcast %cst_24 : f32 to vector<8x128xf32>
    %108 = arith.mulf %107, %106 : vector<8x128xf32>
    %109 = arith.addf %100, %108 : vector<8x128xf32>
    %110 = vector.extract_strided_slice %109 {offsets = [0, 0], sizes = [2, 128], strides = [1, 1]} : vector<8x128xf32> to vector<2x128xf32>
    %111 = vector.extract_strided_slice %109 {offsets = [0, 0], sizes = [6, 128], strides = [1, 1]} : vector<8x128xf32> to vector<6x128xf32>
    %112 = tpu.concatenate %110, %111 in 0 : vector<2x128xf32>, vector<6x128xf32> -> vector<8x128xf32>
    %cst_25 = arith.constant 0.000000e+00 : f32
    %113 = vector.broadcast %cst_25 : f32 to vector<8x128xf32>
    %114 = vector.shape_cast %41 : vector<8x1xi1> to vector<8x1xi1>
    %115 = vector.broadcast %114 : vector<8x1xi1> to vector<8x128xi1>
    %116 = arith.select %115, %113, %112 : vector<8x128xi1>, vector<8x128xf32>
    %117 = vector.extract_strided_slice %116 {offsets = [0, 0], sizes = [1, 128], strides = [1, 1]} : vector<8x128xf32> to vector<1x128xf32>
    %118 = vector.extract_strided_slice %116 {offsets = [0, 0], sizes = [7, 128], strides = [1, 1]} : vector<8x128xf32> to vector<7x128xf32>
    %119 = tpu.concatenate %117, %118 in 0 : vector<1x128xf32>, vector<7x128xf32> -> vector<8x128xf32>
    %cst_26 = arith.constant 0.000000e+00 : f32
    %120 = vector.broadcast %cst_26 : f32 to vector<8x128xf32>
    %121 = vector.shape_cast %37 : vector<8x1xi1> to vector<8x1xi1>
    %122 = vector.broadcast %121 : vector<8x1xi1> to vector<8x128xi1>
    %123 = arith.select %122, %120, %119 : vector<8x128xi1>, vector<8x128xf32>
    %124 = arith.truncf %123 : vector<8x128xf32> to vector<8x128xbf16>
    %125 = vector.extract_strided_slice %98 {offsets = [0, 0], sizes = [2, 128], strides = [1, 1]} : vector<8x128xf32> to vector<2x128xf32>
    %126 = vector.extract_strided_slice %98 {offsets = [0, 0], sizes = [6, 128], strides = [1, 1]} : vector<8x128xf32> to vector<6x128xf32>
    %127 = tpu.concatenate %125, %126 in 0 : vector<2x128xf32>, vector<6x128xf32> -> vector<8x128xf32>
    %cst_27 = arith.constant 0.000000e+00 : f32
    %128 = vector.broadcast %cst_27 : f32 to vector<8x128xf32>
    %129 = vector.shape_cast %41 : vector<8x1xi1> to vector<8x1xi1>
    %130 = vector.broadcast %129 : vector<8x1xi1> to vector<8x128xi1>
    %131 = arith.select %130, %128, %127 : vector<8x128xi1>, vector<8x128xf32>
    %132 = arith.truncf %131 : vector<8x128xf32> to vector<8x128xbf16>
    %133 = vector.extract_strided_slice %109 {offsets = [0, 0], sizes = [2, 128], strides = [1, 1]} : vector<8x128xf32> to vector<2x128xf32>
    %134 = vector.extract_strided_slice %109 {offsets = [0, 0], sizes = [6, 128], strides = [1, 1]} : vector<8x128xf32> to vector<6x128xf32>
    %135 = tpu.concatenate %133, %134 in 0 : vector<2x128xf32>, vector<6x128xf32> -> vector<8x128xf32>
    %cst_28 = arith.constant 0.000000e+00 : f32
    %136 = vector.broadcast %cst_28 : f32 to vector<8x128xf32>
    %137 = vector.shape_cast %41 : vector<8x1xi1> to vector<8x1xi1>
    %138 = vector.broadcast %137 : vector<8x1xi1> to vector<8x128xi1>
    %139 = arith.select %138, %136, %135 : vector<8x128xi1>, vector<8x128xf32>
    %140 = arith.truncf %139 : vector<8x128xf32> to vector<8x128xbf16>
    %141 = vector.extract_strided_slice %98 {offsets = [0, 0], sizes = [2, 128], strides = [1, 1]} : vector<8x128xf32> to vector<2x128xf32>
    %142 = vector.extract_strided_slice %98 {offsets = [0, 0], sizes = [6, 128], strides = [1, 1]} : vector<8x128xf32> to vector<6x128xf32>
    %143 = tpu.concatenate %141, %142 in 0 : vector<2x128xf32>, vector<6x128xf32> -> vector<8x128xf32>
    %cst_29 = arith.constant 0.000000e+00 : f32
    %144 = vector.broadcast %cst_29 : f32 to vector<8x128xf32>
    %145 = vector.shape_cast %41 : vector<8x1xi1> to vector<8x1xi1>
    %146 = vector.broadcast %145 : vector<8x1xi1> to vector<8x128xi1>
    %147 = arith.select %146, %144, %143 : vector<8x128xi1>, vector<8x128xf32>
    %148 = vector.extract_strided_slice %147 {offsets = [1, 0], sizes = [7, 128], strides = [1, 1]} : vector<8x128xf32> to vector<7x128xf32>
    %149 = vector.extract_strided_slice %147 {offsets = [7, 0], sizes = [1, 128], strides = [1, 1]} : vector<8x128xf32> to vector<1x128xf32>
    %150 = tpu.concatenate %148, %149 in 0 : vector<7x128xf32>, vector<1x128xf32> -> vector<8x128xf32>
    %cst_30 = arith.constant 0.000000e+00 : f32
    %151 = vector.broadcast %cst_30 : f32 to vector<8x128xf32>
    %152 = vector.shape_cast %39 : vector<8x1xi1> to vector<8x1xi1>
    %153 = vector.broadcast %152 : vector<8x1xi1> to vector<8x128xi1>
    %154 = arith.select %153, %151, %150 : vector<8x128xi1>, vector<8x128xf32>
    %155 = arith.truncf %154 : vector<8x128xf32> to vector<8x128xbf16>
    %156 = vector.extract_strided_slice %87 {offsets = [0, 0], sizes = [1, 128], strides = [1, 1]} : vector<8x128xf32> to vector<1x128xf32>
    %157 = vector.extract_strided_slice %87 {offsets = [0, 0], sizes = [7, 128], strides = [1, 1]} : vector<8x128xf32> to vector<7x128xf32>
    %158 = tpu.concatenate %156, %157 in 0 : vector<1x128xf32>, vector<7x128xf32> -> vector<8x128xf32>
    %cst_31 = arith.constant 0.000000e+00 : f32
    %159 = vector.broadcast %cst_31 : f32 to vector<8x128xf32>
    %160 = vector.shape_cast %37 : vector<8x1xi1> to vector<8x1xi1>
    %161 = vector.broadcast %160 : vector<8x1xi1> to vector<8x128xi1>
    %162 = arith.select %161, %159, %158 : vector<8x128xi1>, vector<8x128xf32>
    %163 = arith.truncf %162 : vector<8x128xf32> to vector<8x128xbf16>
    %164 = arith.truncf %76 : vector<8x128xf32> to vector<8x128xbf16>
    %165 = arith.truncf %87 : vector<8x128xf32> to vector<8x128xbf16>
    %166 = vector.extract_strided_slice %76 {offsets = [1, 0], sizes = [7, 128], strides = [1, 1]} : vector<8x128xf32> to vector<7x128xf32>
    %167 = vector.extract_strided_slice %76 {offsets = [7, 0], sizes = [1, 128], strides = [1, 1]} : vector<8x128xf32> to vector<1x128xf32>
    %168 = tpu.concatenate %166, %167 in 0 : vector<7x128xf32>, vector<1x128xf32> -> vector<8x128xf32>
    %cst_32 = arith.constant 0.000000e+00 : f32
    %169 = vector.broadcast %cst_32 : f32 to vector<8x128xf32>
    %170 = vector.shape_cast %39 : vector<8x1xi1> to vector<8x1xi1>
    %171 = vector.broadcast %170 : vector<8x1xi1> to vector<8x128xi1>
    %172 = arith.select %171, %169, %168 : vector<8x128xi1>, vector<8x128xf32>
    %173 = arith.truncf %172 : vector<8x128xf32> to vector<8x128xbf16>
    %174 = vector.extract_strided_slice %109 {offsets = [0, 0], sizes = [1, 128], strides = [1, 1]} : vector<8x128xf32> to vector<1x128xf32>
    %175 = vector.extract_strided_slice %109 {offsets = [0, 0], sizes = [7, 128], strides = [1, 1]} : vector<8x128xf32> to vector<7x128xf32>
    %176 = tpu.concatenate %174, %175 in 0 : vector<1x128xf32>, vector<7x128xf32> -> vector<8x128xf32>
    %cst_33 = arith.constant 0.000000e+00 : f32
    %177 = vector.broadcast %cst_33 : f32 to vector<8x128xf32>
    %178 = vector.shape_cast %37 : vector<8x1xi1> to vector<8x1xi1>
    %179 = vector.broadcast %178 : vector<8x1xi1> to vector<8x128xi1>
    %180 = arith.select %179, %177, %176 : vector<8x128xi1>, vector<8x128xf32>
    %181 = arith.truncf %180 : vector<8x128xf32> to vector<8x128xbf16>
    %182 = arith.truncf %98 : vector<8x128xf32> to vector<8x128xbf16>
    %183 = arith.truncf %109 : vector<8x128xf32> to vector<8x128xbf16>
    %184 = vector.extract_strided_slice %98 {offsets = [1, 0], sizes = [7, 128], strides = [1, 1]} : vector<8x128xf32> to vector<7x128xf32>
    %185 = vector.extract_strided_slice %98 {offsets = [7, 0], sizes = [1, 128], strides = [1, 1]} : vector<8x128xf32> to vector<1x128xf32>
    %186 = tpu.concatenate %184, %185 in 0 : vector<7x128xf32>, vector<1x128xf32> -> vector<8x128xf32>
    %cst_34 = arith.constant 0.000000e+00 : f32
    %187 = vector.broadcast %cst_34 : f32 to vector<8x128xf32>
    %188 = vector.shape_cast %39 : vector<8x1xi1> to vector<8x1xi1>
    %189 = vector.broadcast %188 : vector<8x1xi1> to vector<8x128xi1>
    %190 = arith.select %189, %187, %186 : vector<8x128xi1>, vector<8x128xf32>
    %191 = arith.truncf %190 : vector<8x128xf32> to vector<8x128xbf16>
    %192 = vector.extract_strided_slice %87 {offsets = [2, 0], sizes = [6, 128], strides = [1, 1]} : vector<8x128xf32> to vector<6x128xf32>
    %193 = vector.extract_strided_slice %87 {offsets = [6, 0], sizes = [2, 128], strides = [1, 1]} : vector<8x128xf32> to vector<2x128xf32>
    %194 = tpu.concatenate %192, %193 in 0 : vector<6x128xf32>, vector<2x128xf32> -> vector<8x128xf32>
    %cst_35 = arith.constant 0.000000e+00 : f32
    %195 = vector.broadcast %cst_35 : f32 to vector<8x128xf32>
    %196 = vector.shape_cast %43 : vector<8x1xi1> to vector<8x1xi1>
    %197 = vector.broadcast %196 : vector<8x1xi1> to vector<8x128xi1>
    %198 = arith.select %197, %195, %194 : vector<8x128xi1>, vector<8x128xf32>
    %199 = vector.extract_strided_slice %198 {offsets = [0, 0], sizes = [1, 128], strides = [1, 1]} : vector<8x128xf32> to vector<1x128xf32>
    %200 = vector.extract_strided_slice %198 {offsets = [0, 0], sizes = [7, 128], strides = [1, 1]} : vector<8x128xf32> to vector<7x128xf32>
    %201 = tpu.concatenate %199, %200 in 0 : vector<1x128xf32>, vector<7x128xf32> -> vector<8x128xf32>
    %cst_36 = arith.constant 0.000000e+00 : f32
    %202 = vector.broadcast %cst_36 : f32 to vector<8x128xf32>
    %203 = vector.shape_cast %37 : vector<8x1xi1> to vector<8x1xi1>
    %204 = vector.broadcast %203 : vector<8x1xi1> to vector<8x128xi1>
    %205 = arith.select %204, %202, %201 : vector<8x128xi1>, vector<8x128xf32>
    %206 = arith.truncf %205 : vector<8x128xf32> to vector<8x128xbf16>
    %207 = vector.extract_strided_slice %76 {offsets = [2, 0], sizes = [6, 128], strides = [1, 1]} : vector<8x128xf32> to vector<6x128xf32>
    %208 = vector.extract_strided_slice %76 {offsets = [6, 0], sizes = [2, 128], strides = [1, 1]} : vector<8x128xf32> to vector<2x128xf32>
    %209 = tpu.concatenate %207, %208 in 0 : vector<6x128xf32>, vector<2x128xf32> -> vector<8x128xf32>
    %cst_37 = arith.constant 0.000000e+00 : f32
    %210 = vector.broadcast %cst_37 : f32 to vector<8x128xf32>
    %211 = vector.shape_cast %43 : vector<8x1xi1> to vector<8x1xi1>
    %212 = vector.broadcast %211 : vector<8x1xi1> to vector<8x128xi1>
    %213 = arith.select %212, %210, %209 : vector<8x128xi1>, vector<8x128xf32>
    %214 = arith.truncf %213 : vector<8x128xf32> to vector<8x128xbf16>
    %215 = vector.extract_strided_slice %87 {offsets = [2, 0], sizes = [6, 128], strides = [1, 1]} : vector<8x128xf32> to vector<6x128xf32>
    %216 = vector.extract_strided_slice %87 {offsets = [6, 0], sizes = [2, 128], strides = [1, 1]} : vector<8x128xf32> to vector<2x128xf32>
    %217 = tpu.concatenate %215, %216 in 0 : vector<6x128xf32>, vector<2x128xf32> -> vector<8x128xf32>
    %cst_38 = arith.constant 0.000000e+00 : f32
    %218 = vector.broadcast %cst_38 : f32 to vector<8x128xf32>
    %219 = vector.shape_cast %43 : vector<8x1xi1> to vector<8x1xi1>
    %220 = vector.broadcast %219 : vector<8x1xi1> to vector<8x128xi1>
    %221 = arith.select %220, %218, %217 : vector<8x128xi1>, vector<8x128xf32>
    %222 = arith.truncf %221 : vector<8x128xf32> to vector<8x128xbf16>
    %223 = vector.extract_strided_slice %76 {offsets = [2, 0], sizes = [6, 128], strides = [1, 1]} : vector<8x128xf32> to vector<6x128xf32>
    %224 = vector.extract_strided_slice %76 {offsets = [6, 0], sizes = [2, 128], strides = [1, 1]} : vector<8x128xf32> to vector<2x128xf32>
    %225 = tpu.concatenate %223, %224 in 0 : vector<6x128xf32>, vector<2x128xf32> -> vector<8x128xf32>
    %cst_39 = arith.constant 0.000000e+00 : f32
    %226 = vector.broadcast %cst_39 : f32 to vector<8x128xf32>
    %227 = vector.shape_cast %43 : vector<8x1xi1> to vector<8x1xi1>
    %228 = vector.broadcast %227 : vector<8x1xi1> to vector<8x128xi1>
    %229 = arith.select %228, %226, %225 : vector<8x128xi1>, vector<8x128xf32>
    %230 = vector.extract_strided_slice %229 {offsets = [1, 0], sizes = [7, 128], strides = [1, 1]} : vector<8x128xf32> to vector<7x128xf32>
    %231 = vector.extract_strided_slice %229 {offsets = [7, 0], sizes = [1, 128], strides = [1, 1]} : vector<8x128xf32> to vector<1x128xf32>
    %232 = tpu.concatenate %230, %231 in 0 : vector<7x128xf32>, vector<1x128xf32> -> vector<8x128xf32>
    %cst_40 = arith.constant 0.000000e+00 : f32
    %233 = vector.broadcast %cst_40 : f32 to vector<8x128xf32>
    %234 = vector.shape_cast %39 : vector<8x1xi1> to vector<8x1xi1>
    %235 = vector.broadcast %234 : vector<8x1xi1> to vector<8x128xi1>
    %236 = arith.select %235, %233, %232 : vector<8x128xi1>, vector<8x128xf32>
    %237 = arith.truncf %236 : vector<8x128xf32> to vector<8x128xbf16>
    %cst_41 = arith.constant 0.000000e+00 : f32
    %238 = vector.broadcast %cst_41 : f32 to vector<32x128xf32>
    %239 = tpu.concatenate %124, %132, %163, %164 in 0 : vector<8x128xbf16>, vector<8x128xbf16>, vector<8x128xbf16>, vector<8x128xbf16> -> vector<32x128xbf16>
    %c0_42 = arith.constant 0 : index
    %c0_43 = arith.constant 0 : index
    %c0_44 = arith.constant 0 : index
    %240 = vector.load %arg2[%c0_42, %c0_43, %c0_44] : memref<9x128x128xbf16, #tpu.memory_space<vmem>>, vector<1x128x128xbf16>
    %241 = vector.shape_cast %240 : vector<1x128x128xbf16> to vector<128x128xbf16>
    %cst_45 = arith.constant dense<0.000000e+00> : vector<32x128xf32>
    %242 = tpu.matmul %239, %241, %cst_45 {dimension_numbers = #tpu.dot_dimension_numbers<[1], [0], [0], [1], [0, 0, 1, 1], [], []>} : vector<32x128xbf16>, vector<128x128xbf16>, vector<32x128xf32> -> vector<32x128xf32>
    %243 = arith.addf %238, %242 : vector<32x128xf32>
    %244 = tpu.concatenate %132, %140, %164, %165 in 0 : vector<8x128xbf16>, vector<8x128xbf16>, vector<8x128xbf16>, vector<8x128xbf16> -> vector<32x128xbf16>
    %c1 = arith.constant 1 : index
    %c0_46 = arith.constant 0 : index
    %c0_47 = arith.constant 0 : index
    %245 = vector.load %arg2[%c1, %c0_46, %c0_47] : memref<9x128x128xbf16, #tpu.memory_space<vmem>>, vector<1x128x128xbf16>
    %246 = vector.shape_cast %245 : vector<1x128x128xbf16> to vector<128x128xbf16>
    %cst_48 = arith.constant dense<0.000000e+00> : vector<32x128xf32>
    %247 = tpu.matmul %244, %246, %cst_48 {dimension_numbers = #tpu.dot_dimension_numbers<[1], [0], [0], [1], [0, 0, 1, 1], [], []>} : vector<32x128xbf16>, vector<128x128xbf16>, vector<32x128xf32> -> vector<32x128xf32>
    %248 = arith.addf %243, %247 : vector<32x128xf32>
    %249 = tpu.concatenate %140, %155, %165, %173 in 0 : vector<8x128xbf16>, vector<8x128xbf16>, vector<8x128xbf16>, vector<8x128xbf16> -> vector<32x128xbf16>
    %c2 = arith.constant 2 : index
    %c0_49 = arith.constant 0 : index
    %c0_50 = arith.constant 0 : index
    %250 = vector.load %arg2[%c2, %c0_49, %c0_50] : memref<9x128x128xbf16, #tpu.memory_space<vmem>>, vector<1x128x128xbf16>
    %251 = vector.shape_cast %250 : vector<1x128x128xbf16> to vector<128x128xbf16>
    %cst_51 = arith.constant dense<0.000000e+00> : vector<32x128xf32>
    %252 = tpu.matmul %249, %251, %cst_51 {dimension_numbers = #tpu.dot_dimension_numbers<[1], [0], [0], [1], [0, 0, 1, 1], [], []>} : vector<32x128xbf16>, vector<128x128xbf16>, vector<32x128xf32> -> vector<32x128xf32>
    %253 = arith.addf %248, %252 : vector<32x128xf32>
    %254 = tpu.concatenate %163, %164, %181, %182 in 0 : vector<8x128xbf16>, vector<8x128xbf16>, vector<8x128xbf16>, vector<8x128xbf16> -> vector<32x128xbf16>
    %c3 = arith.constant 3 : index
    %c0_52 = arith.constant 0 : index
    %c0_53 = arith.constant 0 : index
    %255 = vector.load %arg2[%c3, %c0_52, %c0_53] : memref<9x128x128xbf16, #tpu.memory_space<vmem>>, vector<1x128x128xbf16>
    %256 = vector.shape_cast %255 : vector<1x128x128xbf16> to vector<128x128xbf16>
    %cst_54 = arith.constant dense<0.000000e+00> : vector<32x128xf32>
    %257 = tpu.matmul %254, %256, %cst_54 {dimension_numbers = #tpu.dot_dimension_numbers<[1], [0], [0], [1], [0, 0, 1, 1], [], []>} : vector<32x128xbf16>, vector<128x128xbf16>, vector<32x128xf32> -> vector<32x128xf32>
    %258 = arith.addf %253, %257 : vector<32x128xf32>
    %259 = tpu.concatenate %164, %165, %182, %183 in 0 : vector<8x128xbf16>, vector<8x128xbf16>, vector<8x128xbf16>, vector<8x128xbf16> -> vector<32x128xbf16>
    %c4 = arith.constant 4 : index
    %c0_55 = arith.constant 0 : index
    %c0_56 = arith.constant 0 : index
    %260 = vector.load %arg2[%c4, %c0_55, %c0_56] : memref<9x128x128xbf16, #tpu.memory_space<vmem>>, vector<1x128x128xbf16>
    %261 = vector.shape_cast %260 : vector<1x128x128xbf16> to vector<128x128xbf16>
    %cst_57 = arith.constant dense<0.000000e+00> : vector<32x128xf32>
    %262 = tpu.matmul %259, %261, %cst_57 {dimension_numbers = #tpu.dot_dimension_numbers<[1], [0], [0], [1], [0, 0, 1, 1], [], []>} : vector<32x128xbf16>, vector<128x128xbf16>, vector<32x128xf32> -> vector<32x128xf32>
    %263 = arith.addf %258, %262 : vector<32x128xf32>
    %264 = tpu.concatenate %165, %173, %183, %191 in 0 : vector<8x128xbf16>, vector<8x128xbf16>, vector<8x128xbf16>, vector<8x128xbf16> -> vector<32x128xbf16>
    %c5 = arith.constant 5 : index
    %c0_58 = arith.constant 0 : index
    %c0_59 = arith.constant 0 : index
    %265 = vector.load %arg2[%c5, %c0_58, %c0_59] : memref<9x128x128xbf16, #tpu.memory_space<vmem>>, vector<1x128x128xbf16>
    %266 = vector.shape_cast %265 : vector<1x128x128xbf16> to vector<128x128xbf16>
    %cst_60 = arith.constant dense<0.000000e+00> : vector<32x128xf32>
    %267 = tpu.matmul %264, %266, %cst_60 {dimension_numbers = #tpu.dot_dimension_numbers<[1], [0], [0], [1], [0, 0, 1, 1], [], []>} : vector<32x128xbf16>, vector<128x128xbf16>, vector<32x128xf32> -> vector<32x128xf32>
    %268 = arith.addf %263, %267 : vector<32x128xf32>
    %269 = tpu.concatenate %181, %182, %206, %214 in 0 : vector<8x128xbf16>, vector<8x128xbf16>, vector<8x128xbf16>, vector<8x128xbf16> -> vector<32x128xbf16>
    %c6 = arith.constant 6 : index
    %c0_61 = arith.constant 0 : index
    %c0_62 = arith.constant 0 : index
    %270 = vector.load %arg2[%c6, %c0_61, %c0_62] : memref<9x128x128xbf16, #tpu.memory_space<vmem>>, vector<1x128x128xbf16>
    %271 = vector.shape_cast %270 : vector<1x128x128xbf16> to vector<128x128xbf16>
    %cst_63 = arith.constant dense<0.000000e+00> : vector<32x128xf32>
    %272 = tpu.matmul %269, %271, %cst_63 {dimension_numbers = #tpu.dot_dimension_numbers<[1], [0], [0], [1], [0, 0, 1, 1], [], []>} : vector<32x128xbf16>, vector<128x128xbf16>, vector<32x128xf32> -> vector<32x128xf32>
    %273 = arith.addf %268, %272 : vector<32x128xf32>
    %274 = tpu.concatenate %182, %183, %214, %222 in 0 : vector<8x128xbf16>, vector<8x128xbf16>, vector<8x128xbf16>, vector<8x128xbf16> -> vector<32x128xbf16>
    %c7 = arith.constant 7 : index
    %c0_64 = arith.constant 0 : index
    %c0_65 = arith.constant 0 : index
    %275 = vector.load %arg2[%c7, %c0_64, %c0_65] : memref<9x128x128xbf16, #tpu.memory_space<vmem>>, vector<1x128x128xbf16>
    %276 = vector.shape_cast %275 : vector<1x128x128xbf16> to vector<128x128xbf16>
    %cst_66 = arith.constant dense<0.000000e+00> : vector<32x128xf32>
    %277 = tpu.matmul %274, %276, %cst_66 {dimension_numbers = #tpu.dot_dimension_numbers<[1], [0], [0], [1], [0, 0, 1, 1], [], []>} : vector<32x128xbf16>, vector<128x128xbf16>, vector<32x128xf32> -> vector<32x128xf32>
    %278 = arith.addf %273, %277 : vector<32x128xf32>
    %279 = tpu.concatenate %183, %191, %222, %237 in 0 : vector<8x128xbf16>, vector<8x128xbf16>, vector<8x128xbf16>, vector<8x128xbf16> -> vector<32x128xbf16>
    %c8 = arith.constant 8 : index
    %c0_67 = arith.constant 0 : index
    %c0_68 = arith.constant 0 : index
    %280 = vector.load %arg2[%c8, %c0_67, %c0_68] : memref<9x128x128xbf16, #tpu.memory_space<vmem>>, vector<1x128x128xbf16>
    %281 = vector.shape_cast %280 : vector<1x128x128xbf16> to vector<128x128xbf16>
    %cst_69 = arith.constant dense<0.000000e+00> : vector<32x128xf32>
    %282 = tpu.matmul %279, %281, %cst_69 {dimension_numbers = #tpu.dot_dimension_numbers<[1], [0], [0], [1], [0, 0, 1, 1], [], []>} : vector<32x128xbf16>, vector<128x128xbf16>, vector<32x128xf32> -> vector<32x128xf32>
    %283 = arith.addf %278, %282 : vector<32x128xf32>
    %c0_70 = arith.constant 0 : index
    %c0_71 = arith.constant 0 : index
    %284 = vector.load %arg3[%c0_70, %c0_71] : memref<1x128xf32, #tpu.memory_space<vmem>>, vector<1x128xf32>
    %285 = vector.broadcast %284 : vector<1x128xf32> to vector<32x128xf32>
    %286 = arith.mulf %283, %285 : vector<32x128xf32>
    %c0_72 = arith.constant 0 : index
    %c0_73 = arith.constant 0 : index
    %287 = vector.load %arg4[%c0_72, %c0_73] : memref<1x128xf32, #tpu.memory_space<vmem>>, vector<1x128xf32>
    %288 = vector.broadcast %287 : vector<1x128xf32> to vector<32x128xf32>
    %289 = arith.addf %286, %288 : vector<32x128xf32>
    %cst_74 = arith.constant 0.000000e+00 : f32
    %290 = vector.broadcast %cst_74 : f32 to vector<32x128xf32>
    %291 = arith.cmpf oge, %289, %290 : vector<32x128xf32>
    %cst_75 = arith.constant 0.00999999977 : f32
    %292 = vector.broadcast %cst_75 : f32 to vector<32x128xf32>
    %293 = arith.mulf %292, %289 : vector<32x128xf32>
    %294 = arith.select %291, %289, %293 : vector<32x128xi1>, vector<32x128xf32>
    %c0_76 = arith.constant 0 : index
    %c0_77 = arith.constant 0 : index
    %c0_78 = arith.constant 0 : index
    %295 = vector.load %arg5[%c0_76, %c0_77, %c0_78] : memref<1x32x128xf32, #tpu.memory_space<vmem>>, vector<1x32x128xf32>
    %296 = vector.shape_cast %295 : vector<1x32x128xf32> to vector<32x128xf32>
    %297 = vector.shape_cast %294 : vector<32x128xf32> to vector<1x32x128xf32>
    tpu.vector_store %arg5[%c0_76, %c0_77, %c0_78], %297 {strides = array<i32>} : memref<1x32x128xf32, #tpu.memory_space<vmem>>, vector<1x32x128xf32>,
    return
  }
  func.func @transform_0(%arg0: i32) -> (i32, i32, i32) {
    %c0_i32 = arith.constant 0 : i32
    %c0_i32_0 = arith.constant 0 : i32
    %c0_i32_1 = arith.constant 0 : i32
    return %arg0, %c0_i32, %c0_i32_0 : i32, i32, i32
  }
  func.func @transform_1(%arg0: i32) -> (i32, i32, i32) {
    %c0_i32 = arith.constant 0 : i32
    %c0_i32_0 = arith.constant 0 : i32
    %c0_i32_1 = arith.constant 0 : i32
    %c0_i32_2 = arith.constant 0 : i32
    return %c0_i32, %c0_i32_0, %c0_i32_1 : i32, i32, i32
  }
  func.func @transform_2(%arg0: i32) -> (i32, i32) {
    %c0_i32 = arith.constant 0 : i32
    %c0_i32_0 = arith.constant 0 : i32
    %c0_i32_1 = arith.constant 0 : i32
    return %c0_i32, %c0_i32_0 : i32, i32
  }
  func.func @transform_3(%arg0: i32) -> (i32, i32) {
    %c0_i32 = arith.constant 0 : i32
    %c0_i32_0 = arith.constant 0 : i32
    %c0_i32_1 = arith.constant 0 : i32
    return %c0_i32, %c0_i32_0 : i32, i32
  }
  func.func @transform_4(%arg0: i32) -> (i32, i32, i32) {
    %c0_i32 = arith.constant 0 : i32
    %c0_i32_0 = arith.constant 0 : i32
    %c0_i32_1 = arith.constant 0 : i32
    return %arg0, %c0_i32, %c0_i32_0 : i32, i32, i32
  }
}

</mosaic_0001>

<llo_original>
// kernel: tpu_custom_call.1
$region0: #{tpu_custom_call.1}
  #allocation0 [shape = 'u32[]', space=smem, size = 0x4, offset = 0x4, fixed_abs, tag = 'smem constant byte address 0x4 - core index']
  #allocation1 [shape = 'u32[72,128]{1,0:T(1,128)}', space=vmem, size = 0x9000, scoped, tag = 'internal scratch']
  %s0 = inlined_call_operand.hbm [shape: bf16[1,8,128], index: 0, kind: input, shape index: {}]
  %s1 = inlined_call_operand.hbm [shape: bf16[9,128,128], index: 1, kind: input, shape index: {}]
  %s2 = inlined_call_operand.vmem [shape: f32[1,128], index: 2, kind: input, shape index: {}]
  %s3 = inlined_call_operand.vmem [shape: f32[1,128], index: 3, kind: input, shape index: {}]
  %s4 = inlined_call_operand.hbm [shape: f32[1,32,128], index: 4, kind: output, shape index: {}]
  %s5 = sld [smem:[#allocation0]]
  $region34: #{tpu_custom_call.1} parent=0
    _
  %s7 = ssub.s32 1, %s5
  %s8 = scalar_select 0, %s7, %s5
  $region1: #{tpu_custom_call.1} parent=0
    #allocation2 [shape = 'u8[2048]{0}', space=vmem, size = 0x800, scoped, tag = 'input window, operand 0, single buffered']
    #allocation3 [shape = 's32[1]{0}', space=sflag, size = 0x4, scoped, tag = 'scoped memory for tpu_custom_call.1']
    #allocation4 [shape = 's32[1]{0}', space=sflag, size = 0x4, scoped, tag = 'scoped memory for tpu_custom_call.1']
    #allocation5 [shape = 'u8[294912]{0}', space=vmem, size = 0x48000, scoped, tag = 'input window, operand 1, single buffered']
    #allocation6 [shape = 's32[1]{0}', space=sflag, size = 0x4, scoped, tag = 'scoped memory for tpu_custom_call.1']
    #allocation7 [shape = 'u8[16384]{0}', space=vmem, size = 0x4000, scoped, tag = 'output window, operand 0, single buffered']
    %9 = vsyncpa [#allocation3], 0
    %10 = vsyncpa [#allocation6], 0
    %11 = vsyncpa [#allocation4], 0
    // Predicated region
    $region2: #{tpu_custom_call.1} parent=1 // pred_check
      _
    $region3: #{tpu_custom_call.1} parent=1 // pred_check_branch
      %13 = sbr.rel (0) target = $region5
    $region4: #{tpu_custom_call.1} parent=1 // pred_region
      %15 = vsyncadd [#allocation3], 0
      %s17 = sshll.u32 %s0, 4
      %s18 = int_to_ptr.hbm [resolvable:$true] %s17
      %s19 = sshll.u32 [#allocation2], 4
      %s20 = int_to_ptr.vmem [resolvable:$true] %s19
      %22 = dma.hbm_to_vmem [thread:$0]  %s18, 64, %s20, [#allocation3]
    $region5: #{tpu_custom_call.1} parent=1 // pred_fallthru
      _
    // Predicated region
    $region6: #{tpu_custom_call.1} parent=1 // pred_check
      _
    $region7: #{tpu_custom_call.1} parent=1 // pred_check_branch
      %24 = sbr.rel (0) target = $region9
    $region8: #{tpu_custom_call.1} parent=1 // pred_region
      %26 = vsyncadd [#allocation6], 0
      %s27 = sshll.u32 %s1, 4
      %s28 = int_to_ptr.hbm [resolvable:$true] %s27
      %s29 = sshll.u32 [#allocation5], 4
      %s30 = int_to_ptr.vmem [resolvable:$true] %s29
      %35 = dma.hbm_to_vmem [thread:$0]  %s28, 9216, %s30, [#allocation6], 64, 64, 4
    $region9: #{tpu_custom_call.1} parent=1 // pred_fallthru
      _
    // Predicated region
    $region10: #{tpu_custom_call.1} parent=1 // pred_check
      _
    $region11: #{tpu_custom_call.1} parent=1 // pred_check_branch
      %37 = sbr.rel (0) target = $region13
    $region12: #{tpu_custom_call.1} parent=1 // pred_region
      _
    $region13: #{tpu_custom_call.1} parent=1 // pred_fallthru
      _
    // Predicated region
    $region14: #{tpu_custom_call.1} parent=1 // pred_check
      _
    $region15: #{tpu_custom_call.1} parent=1 // pred_check_branch
      %39 = sbr.rel (0) target = $region17
    $region16: #{tpu_custom_call.1} parent=1 // pred_region
      _
    $region17: #{tpu_custom_call.1} parent=1 // pred_fallthru
      _
    // Predicated region
    $region18: #{tpu_custom_call.1} parent=1 // pred_check
      _
    $region19: #{tpu_custom_call.1} parent=1 // pred_check_branch
      %41 = sbr.rel (0) target = $region21
    $region20: #{tpu_custom_call.1} parent=1 // pred_region
      %43 = dma.done [#allocation3], 64
    $region21: #{tpu_custom_call.1} parent=1 // pred_fallthru
      _
    // Predicated region
    $region22: #{tpu_custom_call.1} parent=1 // pred_check
      _
    $region23: #{tpu_custom_call.1} parent=1 // pred_check_branch
      %45 = sbr.rel (0) target = $region25
    $region24: #{tpu_custom_call.1} parent=1 // pred_region
      %47 = dma.done [#allocation6], 9216
    $region25: #{tpu_custom_call.1} parent=1 // pred_fallthru
      _
    %v48 = vld [vmem:[#allocation2] sm:$0xf]
    %v49 = vunpack.c.l.bf16 %v48
    %v50 = vlaneseq
    %v51 = vshrl.u32 %v50, 7
    %vm52 = vcmp.lt.s32.totalorder %v51, 0
    %v53 = vsub.s32 0, %v51
    %v54 = vsel %vm52, %v53, %v51
    %v55 = vshrl.u32 %v54, 1
    %v56 = vand.u32 %v54, 1
    %v57 = vsub.s32 0, %v56
    %v58 = vsel %vm52, %v57, %v56
    %vm59 = vcmp.ne.s32.totalorder %v58, 0
    %vm60 = vcmp.lt.s32.totalorder %v58, 0
    %vm61 = vmand %vm60, %vm59
    %v62 = vadd.s32 %v58, 2
    %v63 = vsel %vm61, %v62, %v58
    %vm64 = vcmp.lt.s32.totalorder %v51, 0
    %v65 = vsub.s32 0, %v51
    %v66 = vsel %vm64, %v65, %v51
    %v67 = vshrl.u32 %v66, 2
    %v68 = vand.u32 %v66, 3
    %v69 = vsub.s32 0, %v68
    %v70 = vsel %vm64, %v69, %v68
    %vm71 = vcmp.ne.s32.totalorder %v70, 0
    %vm72 = vcmp.lt.s32.totalorder %v70, 0
    %vm73 = vmand %vm72, %vm71
    %v74 = vadd.s32 %v70, 4
    %v75 = vsel %vm73, %v74, %v70
    %vm76 = vcmp.eq.s32.totalorder %v63, 0
    %vm77 = vcmp.eq.s32.totalorder %v63, 1
    %vm78 = vcmp.lt.s32.totalorder %v75, 2
    %vm79 = vcmp.ge.s32.totalorder %v75, 2
    %v81 = vrot.slane %v49, 6
    %vm83 = vcmask 1041408
    %v84 = vsel %vm83, %v49, %v81
    %v85 = vsel %vm78, 1, 0
    %vm86 = vcmp.eq.s32.totalorder %v85, 1
    %v87 = vsel %vm86, %v49, %v84
    %v88 = vmul.f32 %v87, 0.25
    %v89 = vmul.f32 %v49, 0.75
    %v90 = vadd.f32 %v88, %v89
    %v91 = vrot.slane %v49, 2
    %vm93 = vcmask 1045504
    %v94 = vsel %vm93, %v91, %v49
    %v95 = vsel %vm79, 1, 0
    %vm96 = vcmp.eq.s32.totalorder %v95, 1
    %v97 = vsel %vm96, %v49, %v94
    %v98 = vmul.f32 %v97, 0.25
    %v99 = vadd.f32 %v89, %v98
    %v101 = vrot.slane %v90, 7
    %vm103 = vcmask 1040384
    %v104 = vsel %vm103, %v90, %v101
    %v105 = vsel %vm76, 1, 0
    %vm106 = vcmp.eq.s32.totalorder %v105, 1
    %v107 = vsel %vm106, %v90, %v104
    %v108 = vmul.f32 %v107, 0.25
    %v109 = vmul.f32 %v90, 0.75
    %v110 = vadd.f32 %v108, %v109
    %v111 = vrot.slane %v90, 1
    %vm113 = vcmask 1046528
    %v114 = vsel %vm113, %v111, %v90
    %v115 = vsel %vm77, 1, 0
    %vm116 = vcmp.eq.s32.totalorder %v115, 1
    %v117 = vsel %vm116, %v90, %v114
    %v118 = vmul.f32 %v117, 0.25
    %v119 = vadd.f32 %v109, %v118
    %v121 = vrot.slane %v99, 7
    %v123 = vsel %vm103, %v99, %v121
    %v124 = vsel %vm106, %v99, %v123
    %v125 = vmul.f32 %v124, 0.25
    %v126 = vmul.f32 %v99, 0.75
    %v127 = vadd.f32 %v125, %v126
    %v128 = vrot.slane %v99, 1
    %v130 = vsel %vm113, %v128, %v99
    %v131 = vsel %vm116, %v99, %v130
    %v132 = vmul.f32 %v131, 0.25
    %v133 = vadd.f32 %v126, %v132
    %v135 = vrot.slane %v133, 6
    %v137 = vsel %vm83, %v133, %v135
    %v138 = vsel %vm86, 0.0, %v137
    %v140 = vrot.slane %v138, 7
    %v142 = vsel %vm103, %v138, %v140
    %v143 = vsel %vm106, 0.0, %v142
    %v144 = vpack.c.bf16 %v143, %v143
    %v146 = vrot.slane %v127, 6
    %v148 = vsel %vm83, %v127, %v146
    %v149 = vsel %vm86, 0.0, %v148
    %v150 = vpack.c.bf16 %v149, %v149
    %v151 = vpack.c.bf16 %v138, %v138
    %v153 = vrot.slane %v149, 1
    %v155 = vsel %vm113, %v153, %v149
    %v156 = vsel %vm116, 0.0, %v155
    %v157 = vpack.c.bf16 %v156, %v156
    %v159 = vrot.slane %v119, 7
    %v161 = vsel %vm103, %v119, %v159
    %v162 = vsel %vm106, 0.0, %v161
    %v163 = vpack.c.bf16 %v162, %v162
    %v164 = vpack.c.bf16 %v110, %v110
    %v165 = vpack.c.bf16 %v119, %v119
    %v167 = vrot.slane %v110, 1
    %v169 = vsel %vm113, %v167, %v110
    %v170 = vsel %vm116, 0.0, %v169
    %v171 = vpack.c.bf16 %v170, %v170
    %v172 = vrot.slane %v133, 7
    %v174 = vsel %vm103, %v133, %v172
    %v175 = vsel %vm106, 0.0, %v174
    %v176 = vpack.c.bf16 %v175, %v175
    %v177 = vpack.c.bf16 %v127, %v127
    %v178 = vpack.c.bf16 %v133, %v133
    %v179 = vrot.slane %v127, 1
    %v181 = vsel %vm113, %v179, %v127
    %v182 = vsel %vm116, 0.0, %v181
    %v183 = vpack.c.bf16 %v182, %v182
    %v184 = vrot.slane %v119, 2
    %v186 = vsel %vm93, %v184, %v119
    %v187 = vsel %vm96, 0.0, %v186
    %v189 = vrot.slane %v187, 7
    %v191 = vsel %vm103, %v187, %v189
    %v192 = vsel %vm106, 0.0, %v191
    %v193 = vpack.c.bf16 %v192, %v192
    %v194 = vrot.slane %v110, 2
    %v196 = vsel %vm93, %v194, %v110
    %v197 = vsel %vm96, 0.0, %v196
    %v198 = vpack.c.bf16 %v197, %v197
    %v199 = vpack.c.bf16 %v187, %v187
    %v201 = vrot.slane %v197, 1
    %v203 = vsel %vm113, %v201, %v197
    %v204 = vsel %vm116, 0.0, %v203
    %v205 = vpack.c.bf16 %v204, %v204
    %v207 = vunpack.c.l.b16 %v150
    %v208 = vpack.c.b16 %v207, %v207
    %v210 = vunpack.c.l.b16 %v164
    %v211 = vpack.c.b16 %v210, %v210
    %vm212 = vcmask 1043456
    %v215 = vsel %vm212, %v144, %v208
    %v219 = vsel %vm212, %v163, %v211
    %v221 = vld [vmem:[#allocation5] sm:$0xf]
    %v222 = vld [vmem:[#allocation5 + $0x4] sm:$0xf]
    %v223 = vld [vmem:[#allocation5 + $0x8] sm:$0xf]
    %v224 = vld [vmem:[#allocation5 + $0xc] sm:$0xf]
    %v225 = vld [vmem:[#allocation5 + $0x10] sm:$0xf]
    %v226 = vld [vmem:[#allocation5 + $0x14] sm:$0xf]
    %v227 = vld [vmem:[#allocation5 + $0x18] sm:$0xf]
    %v228 = vld [vmem:[#allocation5 + $0x1c] sm:$0xf]
    %v229 = vld [vmem:[#allocation5 + $0x20] sm:$0xf]
    %v230 = vld [vmem:[#allocation5 + $0x24] sm:$0xf]
    %v231 = vld [vmem:[#allocation5 + $0x28] sm:$0xf]
    %v232 = vld [vmem:[#allocation5 + $0x2c] sm:$0xf]
    %v233 = vld [vmem:[#allocation5 + $0x30] sm:$0xf]
    %v234 = vld [vmem:[#allocation5 + $0x34] sm:$0xf]
    %v235 = vld [vmem:[#allocation5 + $0x38] sm:$0xf]
    %v236 = vld [vmem:[#allocation5 + $0x3c] sm:$0xf]
    %v238 = vunpack.c.l.b16 %v151
    %v239 = vpack.c.b16 %v238, %v238
    %v241 = vunpack.c.l.b16 %v165
    %v242 = vpack.c.b16 %v241, %v241
    %v245 = vsel %vm212, %v150, %v239
    %v249 = vsel %vm212, %v164, %v242
    %s251 = scalar_lea.vmem [#allocation5], 64
    %v252 = vld [vmem:[%s251] sm:$0xf]
    %v253 = vld [vmem:[%s251 + $0x4] sm:$0xf]
    %v254 = vld [vmem:[%s251 + $0x8] sm:$0xf]
    %v255 = vld [vmem:[%s251 + $0xc] sm:$0xf]
    %v256 = vld [vmem:[%s251 + $0x10] sm:$0xf]
    %v257 = vld [vmem:[%s251 + $0x14] sm:$0xf]
    %v258 = vld [vmem:[%s251 + $0x18] sm:$0xf]
    %v259 = vld [vmem:[%s251 + $0x1c] sm:$0xf]
    %v260 = vld [vmem:[%s251 + $0x20] sm:$0xf]
    %v261 = vld [vmem:[%s251 + $0x24] sm:$0xf]
    %v262 = vld [vmem:[%s251 + $0x28] sm:$0xf]
    %v263 = vld [vmem:[%s251 + $0x2c] sm:$0xf]
    %v264 = vld [vmem:[%s251 + $0x30] sm:$0xf]
    %v265 = vld [vmem:[%s251 + $0x34] sm:$0xf]
    %v266 = vld [vmem:[%s251 + $0x38] sm:$0xf]
    %v267 = vld [vmem:[%s251 + $0x3c] sm:$0xf]
    %v284 = vunpack.c.l.b16 %v252
    %v285 = vunpack.c.l.b16 %v253
    %v286 = vunpack.c.l.b16 %v254
    %v287 = vunpack.c.l.b16 %v255
    %v288 = vunpack.c.l.b16 %v256
    %v289 = vunpack.c.l.b16 %v257
    %v290 = vunpack.c.l.b16 %v258
    %v291 = vunpack.c.l.b16 %v259
    %v292 = vunpack.c.l.b16 %v260
    %v293 = vunpack.c.l.b16 %v261
    %v294 = vunpack.c.l.b16 %v262
    %v295 = vunpack.c.l.b16 %v263
    %v296 = vunpack.c.l.b16 %v264
    %v297 = vunpack.c.l.b16 %v265
    %v298 = vunpack.c.l.b16 %v266
    %v299 = vunpack.c.l.b16 %v267
    %v300 = vpack.c.b16 %v285, %v284
    %v301 = vpack.c.b16 %v287, %v286
    %v302 = vpack.c.b16 %v289, %v288
    %v303 = vpack.c.b16 %v291, %v290
    %v304 = vpack.c.b16 %v293, %v292
    %v305 = vpack.c.b16 %v295, %v294
    %v306 = vpack.c.b16 %v297, %v296
    %v307 = vpack.c.b16 %v299, %v298
    %316 = vmatpush.bf16.msra.mxu0 %v307
    %317 = vmatpush.bf16.msra.mxu0 %v306
    %318 = vmatpush.bf16.msra.mxu0 %v305
    %319 = vmatpush.bf16.msra.mxu0 %v304
    %320 = vmatpush.bf16.msra.mxu0 %v303
    %321 = vmatpush.bf16.msra.mxu0 %v302
    %322 = vmatpush.bf16.msra.mxu0 %v301
    %323 = vmatpush.bf16.msra.mxu0 %v300
    %324 = vmatmul.bf16.gmra.mxu0 %v245
    %v325 = vpop.f32.mrf.mxu0
    %v326 = vadd.f32 0.0, %v325
    %v327 = vpop.f32.mrf.mxu0
    %v328 = vadd.f32 0.0, %v327
    %329 = vmatmul.bf16.gmra.mxu0 %v249
    %v330 = vpop.f32.mrf.mxu0
    %v331 = vadd.f32 0.0, %v330
    %v332 = vpop.f32.mrf.mxu0
    %v333 = vadd.f32 0.0, %v332
    %334 = vdwg.mxu0
    %v351 = vunpack.c.l.b16 %v221
    %v352 = vunpack.c.l.b16 %v222
    %v353 = vunpack.c.l.b16 %v223
    %v354 = vunpack.c.l.b16 %v224
    %v355 = vunpack.c.l.b16 %v225
    %v356 = vunpack.c.l.b16 %v226
    %v357 = vunpack.c.l.b16 %v227
    %v358 = vunpack.c.l.b16 %v228
    %v359 = vunpack.c.l.b16 %v229
    %v360 = vunpack.c.l.b16 %v230
    %v361 = vunpack.c.l.b16 %v231
    %v362 = vunpack.c.l.b16 %v232
    %v363 = vunpack.c.l.b16 %v233
    %v364 = vunpack.c.l.b16 %v234
    %v365 = vunpack.c.l.b16 %v235
    %v366 = vunpack.c.l.b16 %v236
    %v367 = vpack.c.b16 %v352, %v351
    %v368 = vpack.c.b16 %v354, %v353
    %v369 = vpack.c.b16 %v356, %v355
    %v370 = vpack.c.b16 %v358, %v357
    %v371 = vpack.c.b16 %v360, %v359
    %v372 = vpack.c.b16 %v362, %v361
    %v373 = vpack.c.b16 %v364, %v363
    %v374 = vpack.c.b16 %v366, %v365
    %383 = vmatpush.bf16.msra.mxu0 %v374
    %384 = vmatpush.bf16.msra.mxu0 %v373
    %385 = vmatpush.bf16.msra.mxu0 %v372
    %386 = vmatpush.bf16.msra.mxu0 %v371
    %387 = vmatpush.bf16.msra.mxu0 %v370
    %388 = vmatpush.bf16.msra.mxu0 %v369
    %389 = vmatpush.bf16.msra.mxu0 %v368
    %390 = vmatpush.bf16.msra.mxu0 %v367
    %391 = vmatmul.bf16.gmra.mxu0 %v215
    %v392 = vpop.f32.mrf.mxu0
    %v393 = vadd.f32 %v326, %v392
    %v394 = vpop.f32.mrf.mxu0
    %v395 = vadd.f32 %v328, %v394
    %396 = vmatmul.bf16.gmra.mxu0 %v219
    %v397 = vpop.f32.mrf.mxu0
    %v398 = vadd.f32 %v331, %v397
    %v399 = vpop.f32.mrf.mxu0
    %v400 = vadd.f32 %v333, %v399
    %401 = vdwg.mxu0
    %v403 = vunpack.c.l.b16 %v157
    %v404 = vpack.c.b16 %v403, %v403
    %v406 = vunpack.c.l.b16 %v171
    %v407 = vpack.c.b16 %v406, %v406
    %v410 = vsel %vm212, %v151, %v404
    %v414 = vsel %vm212, %v165, %v407
    %s416 = scalar_lea.vmem [#allocation5], 128
    %v417 = vld [vmem:[%s416] sm:$0xf]
    %v418 = vld [vmem:[%s416 + $0x4] sm:$0xf]
    %v419 = vld [vmem:[%s416 + $0x8] sm:$0xf]
    %v420 = vld [vmem:[%s416 + $0xc] sm:$0xf]
    %v421 = vld [vmem:[%s416 + $0x10] sm:$0xf]
    %v422 = vld [vmem:[%s416 + $0x14] sm:$0xf]
    %v423 = vld [vmem:[%s416 + $0x18] sm:$0xf]
    %v424 = vld [vmem:[%s416 + $0x1c] sm:$0xf]
    %v425 = vld [vmem:[%s416 + $0x20] sm:$0xf]
    %v426 = vld [vmem:[%s416 + $0x24] sm:$0xf]
    %v427 = vld [vmem:[%s416 + $0x28] sm:$0xf]
    %v428 = vld [vmem:[%s416 + $0x2c] sm:$0xf]
    %v429 = vld [vmem:[%s416 + $0x30] sm:$0xf]
    %v430 = vld [vmem:[%s416 + $0x34] sm:$0xf]
    %v431 = vld [vmem:[%s416 + $0x38] sm:$0xf]
    %v432 = vld [vmem:[%s416 + $0x3c] sm:$0xf]
    %v449 = vunpack.c.l.b16 %v417
    %v450 = vunpack.c.l.b16 %v418
    %v451 = vunpack.c.l.b16 %v419
    %v452 = vunpack.c.l.b16 %v420
    %v453 = vunpack.c.l.b16 %v421
    %v454 = vunpack.c.l.b16 %v422
    %v455 = vunpack.c.l.b16 %v423
    %v456 = vunpack.c.l.b16 %v424
    %v457 = vunpack.c.l.b16 %v425
    %v458 = vunpack.c.l.b16 %v426
    %v459 = vunpack.c.l.b16 %v427
    %v460 = vunpack.c.l.b16 %v428
    %v461 = vunpack.c.l.b16 %v429
    %v462 = vunpack.c.l.b16 %v430
    %v463 = vunpack.c.l.b16 %v431
    %v464 = vunpack.c.l.b16 %v432
    %v465 = vpack.c.b16 %v450, %v449
    %v466 = vpack.c.b16 %v452, %v451
    %v467 = vpack.c.b16 %v454, %v453
    %v468 = vpack.c.b16 %v456, %v455
    %v469 = vpack.c.b16 %v458, %v457
    %v470 = vpack.c.b16 %v460, %v459
    %v471 = vpack.c.b16 %v462, %v461
    %v472 = vpack.c.b16 %v464, %v463
    %481 = vmatpush.bf16.msra.mxu0 %v472
    %482 = vmatpush.bf16.msra.mxu0 %v471
    %483 = vmatpush.bf16.msra.mxu0 %v470
    %484 = vmatpush.bf16.msra.mxu0 %v469
    %485 = vmatpush.bf16.msra.mxu0 %v468
    %486 = vmatpush.bf16.msra.mxu0 %v467
    %487 = vmatpush.bf16.msra.mxu0 %v466
    %488 = vmatpush.bf16.msra.mxu0 %v465
    %489 = vmatmul.bf16.gmra.mxu0 %v410
    %v490 = vpop.f32.mrf.mxu0
    %v491 = vadd.f32 0.0, %v490
    %v492 = vpop.f32.mrf.mxu0
    %v493 = vadd.f32 0.0, %v492
    %494 = vmatmul.bf16.gmra.mxu0 %v414
    %v495 = vpop.f32.mrf.mxu0
    %v496 = vadd.f32 0.0, %v495
    %v497 = vpop.f32.mrf.mxu0
    %v498 = vadd.f32 0.0, %v497
    %499 = vdwg.mxu0
    %v500 = vadd.f32 %v393, %v491
    %v501 = vadd.f32 %v395, %v493
    %v502 = vadd.f32 %v398, %v496
    %v503 = vadd.f32 %v400, %v498
    %v505 = vunpack.c.l.b16 %v177
    %v506 = vpack.c.b16 %v505, %v505
    %v509 = vsel %vm212, %v176, %v506
    %s511 = scalar_lea.vmem [#allocation5], 192
    %v512 = vld [vmem:[%s511] sm:$0xf]
    %v513 = vld [vmem:[%s511 + $0x4] sm:$0xf]
    %v514 = vld [vmem:[%s511 + $0x8] sm:$0xf]
    %v515 = vld [vmem:[%s511 + $0xc] sm:$0xf]
    %v516 = vld [vmem:[%s511 + $0x10] sm:$0xf]
    %v517 = vld [vmem:[%s511 + $0x14] sm:$0xf]
    %v518 = vld [vmem:[%s511 + $0x18] sm:$0xf]
    %v519 = vld [vmem:[%s511 + $0x1c] sm:$0xf]
    %v520 = vld [vmem:[%s511 + $0x20] sm:$0xf]
    %v521 = vld [vmem:[%s511 + $0x24] sm:$0xf]
    %v522 = vld [vmem:[%s511 + $0x28] sm:$0xf]
    %v523 = vld [vmem:[%s511 + $0x2c] sm:$0xf]
    %v524 = vld [vmem:[%s511 + $0x30] sm:$0xf]
    %v525 = vld [vmem:[%s511 + $0x34] sm:$0xf]
    %v526 = vld [vmem:[%s511 + $0x38] sm:$0xf]
    %v527 = vld [vmem:[%s511 + $0x3c] sm:$0xf]
    %v544 = vunpack.c.l.b16 %v512
    %v545 = vunpack.c.l.b16 %v513
    %v546 = vunpack.c.l.b16 %v514
    %v547 = vunpack.c.l.b16 %v515
    %v548 = vunpack.c.l.b16 %v516
    %v549 = vunpack.c.l.b16 %v517
    %v550 = vunpack.c.l.b16 %v518
    %v551 = vunpack.c.l.b16 %v519
    %v552 = vunpack.c.l.b16 %v520
    %v553 = vunpack.c.l.b16 %v521
    %v554 = vunpack.c.l.b16 %v522
    %v555 = vunpack.c.l.b16 %v523
    %v556 = vunpack.c.l.b16 %v524
    %v557 = vunpack.c.l.b16 %v525
    %v558 = vunpack.c.l.b16 %v526
    %v559 = vunpack.c.l.b16 %v527
    %v560 = vpack.c.b16 %v545, %v544
    %v561 = vpack.c.b16 %v547, %v546
    %v562 = vpack.c.b16 %v549, %v548
    %v563 = vpack.c.b16 %v551, %v550
    %v564 = vpack.c.b16 %v553, %v552
    %v565 = vpack.c.b16 %v555, %v554
    %v566 = vpack.c.b16 %v557, %v556
    %v567 = vpack.c.b16 %v559, %v558
    %576 = vmatpush.bf16.msra.mxu0 %v567
    %577 = vmatpush.bf16.msra.mxu0 %v566
    %578 = vmatpush.bf16.msra.mxu0 %v565
    %579 = vmatpush.bf16.msra.mxu0 %v564
    %580 = vmatpush.bf16.msra.mxu0 %v563
    %581 = vmatpush.bf16.msra.mxu0 %v562
    %582 = vmatpush.bf16.msra.mxu0 %v561
    %583 = vmatpush.bf16.msra.mxu0 %v560
    %584 = vmatmul.bf16.gmra.mxu0 %v219
    %v585 = vpop.f32.mrf.mxu0
    %v586 = vadd.f32 0.0, %v585
    %v587 = vpop.f32.mrf.mxu0
    %v588 = vadd.f32 0.0, %v587
    %589 = vmatmul.bf16.gmra.mxu0 %v509
    %v590 = vpop.f32.mrf.mxu0
    %v591 = vadd.f32 0.0, %v590
    %v592 = vpop.f32.mrf.mxu0
    %v593 = vadd.f32 0.0, %v592
    %594 = vdwg.mxu0
    %v595 = vadd.f32 %v500, %v586
    %v596 = vadd.f32 %v501, %v588
    %v597 = vadd.f32 %v502, %v591
    %v598 = vadd.f32 %v503, %v593
    %v600 = vunpack.c.l.b16 %v178
    %v601 = vpack.c.b16 %v600, %v600
    %v604 = vsel %vm212, %v177, %v601
    %s606 = scalar_lea.vmem [#allocation5], 256
    %v607 = vld [vmem:[%s606] sm:$0xf]
    %v608 = vld [vmem:[%s606 + $0x4] sm:$0xf]
    %v609 = vld [vmem:[%s606 + $0x8] sm:$0xf]
    %v610 = vld [vmem:[%s606 + $0xc] sm:$0xf]
    %v611 = vld [vmem:[%s606 + $0x10] sm:$0xf]
    %v612 = vld [vmem:[%s606 + $0x14] sm:$0xf]
    %v613 = vld [vmem:[%s606 + $0x18] sm:$0xf]
    %v614 = vld [vmem:[%s606 + $0x1c] sm:$0xf]
    %v615 = vld [vmem:[%s606 + $0x20] sm:$0xf]
    %v616 = vld [vmem:[%s606 + $0x24] sm:$0xf]
    %v617 = vld [vmem:[%s606 + $0x28] sm:$0xf]
    %v618 = vld [vmem:[%s606 + $0x2c] sm:$0xf]
    %v619 = vld [vmem:[%s606 + $0x30] sm:$0xf]
    %v620 = vld [vmem:[%s606 + $0x34] sm:$0xf]
    %v621 = vld [vmem:[%s606 + $0x38] sm:$0xf]
    %v622 = vld [vmem:[%s606 + $0x3c] sm:$0xf]
    %v639 = vunpack.c.l.b16 %v607
    %v640 = vunpack.c.l.b16 %v608
    %v641 = vunpack.c.l.b16 %v609
    %v642 = vunpack.c.l.b16 %v610
    %v643 = vunpack.c.l.b16 %v611
    %v644 = vunpack.c.l.b16 %v612
    %v645 = vunpack.c.l.b16 %v613
    %v646 = vunpack.c.l.b16 %v614
    %v647 = vunpack.c.l.b16 %v615
    %v648 = vunpack.c.l.b16 %v616
    %v649 = vunpack.c.l.b16 %v617
    %v650 = vunpack.c.l.b16 %v618
    %v651 = vunpack.c.l.b16 %v619
    %v652 = vunpack.c.l.b16 %v620
    %v653 = vunpack.c.l.b16 %v621
    %v654 = vunpack.c.l.b16 %v622
    %v655 = vpack.c.b16 %v640, %v639
    %v656 = vpack.c.b16 %v642, %v641
    %v657 = vpack.c.b16 %v644, %v643
    %v658 = vpack.c.b16 %v646, %v645
    %v659 = vpack.c.b16 %v648, %v647
    %v660 = vpack.c.b16 %v650, %v649
    %v661 = vpack.c.b16 %v652, %v651
    %v662 = vpack.c.b16 %v654, %v653
    %671 = vmatpush.bf16.msra.mxu0 %v662
    %672 = vmatpush.bf16.msra.mxu0 %v661
    %673 = vmatpush.bf16.msra.mxu0 %v660
    %674 = vmatpush.bf16.msra.mxu0 %v659
    %675 = vmatpush.bf16.msra.mxu0 %v658
    %676 = vmatpush.bf16.msra.mxu0 %v657
    %677 = vmatpush.bf16.msra.mxu0 %v656
    %678 = vmatpush.bf16.msra.mxu0 %v655
    %679 = vmatmul.bf16.gmra.mxu0 %v249
    %v680 = vpop.f32.mrf.mxu0
    %v681 = vadd.f32 0.0, %v680
    %v682 = vpop.f32.mrf.mxu0
    %v683 = vadd.f32 0.0, %v682
    %684 = vmatmul.bf16.gmra.mxu0 %v604
    %v685 = vpop.f32.mrf.mxu0
    %v686 = vadd.f32 0.0, %v685
    %v687 = vpop.f32.mrf.mxu0
    %v688 = vadd.f32 0.0, %v687
    %689 = vdwg.mxu0
    %v690 = vadd.f32 %v595, %v681
    %v691 = vadd.f32 %v596, %v683
    %v692 = vadd.f32 %v597, %v686
    %v693 = vadd.f32 %v598, %v688
    %v695 = vunpack.c.l.b16 %v183
    %v696 = vpack.c.b16 %v695, %v695
    %v699 = vsel %vm212, %v178, %v696
    %s701 = scalar_lea.vmem [#allocation5], 320
    %v702 = vld [vmem:[%s701] sm:$0xf]
    %v703 = vld [vmem:[%s701 + $0x4] sm:$0xf]
    %v704 = vld [vmem:[%s701 + $0x8] sm:$0xf]
    %v705 = vld [vmem:[%s701 + $0xc] sm:$0xf]
    %v706 = vld [vmem:[%s701 + $0x10] sm:$0xf]
    %v707 = vld [vmem:[%s701 + $0x14] sm:$0xf]
    %v708 = vld [vmem:[%s701 + $0x18] sm:$0xf]
    %v709 = vld [vmem:[%s701 + $0x1c] sm:$0xf]
    %v710 = vld [vmem:[%s701 + $0x20] sm:$0xf]
    %v711 = vld [vmem:[%s701 + $0x24] sm:$0xf]
    %v712 = vld [vmem:[%s701 + $0x28] sm:$0xf]
    %v713 = vld [vmem:[%s701 + $0x2c] sm:$0xf]
    %v714 = vld [vmem:[%s701 + $0x30] sm:$0xf]
    %v715 = vld [vmem:[%s701 + $0x34] sm:$0xf]
    %v716 = vld [vmem:[%s701 + $0x38] sm:$0xf]
    %v717 = vld [vmem:[%s701 + $0x3c] sm:$0xf]
    %v734 = vunpack.c.l.b16 %v702
    %v735 = vunpack.c.l.b16 %v703
    %v736 = vunpack.c.l.b16 %v704
    %v737 = vunpack.c.l.b16 %v705
    %v738 = vunpack.c.l.b16 %v706
    %v739 = vunpack.c.l.b16 %v707
    %v740 = vunpack.c.l.b16 %v708
    %v741 = vunpack.c.l.b16 %v709
    %v742 = vunpack.c.l.b16 %v710
    %v743 = vunpack.c.l.b16 %v711
    %v744 = vunpack.c.l.b16 %v712
    %v745 = vunpack.c.l.b16 %v713
    %v746 = vunpack.c.l.b16 %v714
    %v747 = vunpack.c.l.b16 %v715
    %v748 = vunpack.c.l.b16 %v716
    %v749 = vunpack.c.l.b16 %v717
    %v750 = vpack.c.b16 %v735, %v734
    %v751 = vpack.c.b16 %v737, %v736
    %v752 = vpack.c.b16 %v739, %v738
    %v753 = vpack.c.b16 %v741, %v740
    %v754 = vpack.c.b16 %v743, %v742
    %v755 = vpack.c.b16 %v745, %v744
    %v756 = vpack.c.b16 %v747, %v746
    %v757 = vpack.c.b16 %v749, %v748
    %766 = vmatpush.bf16.msra.mxu0 %v757
    %767 = vmatpush.bf16.msra.mxu0 %v756
    %768 = vmatpush.bf16.msra.mxu0 %v755
    %769 = vmatpush.bf16.msra.mxu0 %v754
    %770 = vmatpush.bf16.msra.mxu0 %v753
    %771 = vmatpush.bf16.msra.mxu0 %v752
    %772 = vmatpush.bf16.msra.mxu0 %v751
    %773 = vmatpush.bf16.msra.mxu0 %v750
    %774 = vmatmul.bf16.gmra.mxu0 %v414
    %v775 = vpop.f32.mrf.mxu0
    %v776 = vadd.f32 0.0, %v775
    %v777 = vpop.f32.mrf.mxu0
    %v778 = vadd.f32 0.0, %v777
    %779 = vmatmul.bf16.gmra.mxu0 %v699
    %v780 = vpop.f32.mrf.mxu0
    %v781 = vadd.f32 0.0, %v780
    %v782 = vpop.f32.mrf.mxu0
    %v783 = vadd.f32 0.0, %v782
    %784 = vdwg.mxu0
    %v785 = vadd.f32 %v690, %v776
    %v786 = vadd.f32 %v691, %v778
    %v787 = vadd.f32 %v692, %v781
    %v788 = vadd.f32 %v693, %v783
    %v790 = vunpack.c.l.b16 %v198
    %v791 = vpack.c.b16 %v790, %v790
    %v794 = vsel %vm212, %v193, %v791
    %s796 = scalar_lea.vmem [#allocation5], 384
    %v797 = vld [vmem:[%s796] sm:$0xf]
    %v798 = vld [vmem:[%s796 + $0x4] sm:$0xf]
    %v799 = vld [vmem:[%s796 + $0x8] sm:$0xf]
    %v800 = vld [vmem:[%s796 + $0xc] sm:$0xf]
    %v801 = vld [vmem:[%s796 + $0x10] sm:$0xf]
    %v802 = vld [vmem:[%s796 + $0x14] sm:$0xf]
    %v803 = vld [vmem:[%s796 + $0x18] sm:$0xf]
    %v804 = vld [vmem:[%s796 + $0x1c] sm:$0xf]
    %v805 = vld [vmem:[%s796 + $0x20] sm:$0xf]
    %v806 = vld [vmem:[%s796 + $0x24] sm:$0xf]
    %v807 = vld [vmem:[%s796 + $0x28] sm:$0xf]
    %v808 = vld [vmem:[%s796 + $0x2c] sm:$0xf]
    %v809 = vld [vmem:[%s796 + $0x30] sm:$0xf]
    %v810 = vld [vmem:[%s796 + $0x34] sm:$0xf]
    %v811 = vld [vmem:[%s796 + $0x38] sm:$0xf]
    %v812 = vld [vmem:[%s796 + $0x3c] sm:$0xf]
    %v829 = vunpack.c.l.b16 %v797
    %v830 = vunpack.c.l.b16 %v798
    %v831 = vunpack.c.l.b16 %v799
    %v832 = vunpack.c.l.b16 %v800
    %v833 = vunpack.c.l.b16 %v801
    %v834 = vunpack.c.l.b16 %v802
    %v835 = vunpack.c.l.b16 %v803
    %v836 = vunpack.c.l.b16 %v804
    %v837 = vunpack.c.l.b16 %v805
    %v838 = vunpack.c.l.b16 %v806
    %v839 = vunpack.c.l.b16 %v807
    %v840 = vunpack.c.l.b16 %v808
    %v841 = vunpack.c.l.b16 %v809
    %v842 = vunpack.c.l.b16 %v810
    %v843 = vunpack.c.l.b16 %v811
    %v844 = vunpack.c.l.b16 %v812
    %v845 = vpack.c.b16 %v830, %v829
    %v846 = vpack.c.b16 %v832, %v831
    %v847 = vpack.c.b16 %v834, %v833
    %v848 = vpack.c.b16 %v836, %v835
    %v849 = vpack.c.b16 %v838, %v837
    %v850 = vpack.c.b16 %v840, %v839
    %v851 = vpack.c.b16 %v842, %v841
    %v852 = vpack.c.b16 %v844, %v843
    %861 = vmatpush.bf16.msra.mxu0 %v852
    %862 = vmatpush.bf16.msra.mxu0 %v851
    %863 = vmatpush.bf16.msra.mxu0 %v850
    %864 = vmatpush.bf16.msra.mxu0 %v849
    %865 = vmatpush.bf16.msra.mxu0 %v848
    %866 = vmatpush.bf16.msra.mxu0 %v847
    %867 = vmatpush.bf16.msra.mxu0 %v846
    %868 = vmatpush.bf16.msra.mxu0 %v845
    %869 = vmatmul.bf16.gmra.mxu0 %v509
    %v870 = vpop.f32.mrf.mxu0
    %v871 = vadd.f32 0.0, %v870
    %v872 = vpop.f32.mrf.mxu0
    %v873 = vadd.f32 0.0, %v872
    %874 = vmatmul.bf16.gmra.mxu0 %v794
    %v875 = vpop.f32.mrf.mxu0
    %v876 = vadd.f32 0.0, %v875
    %v877 = vpop.f32.mrf.mxu0
    %v878 = vadd.f32 0.0, %v877
    %879 = vdwg.mxu0
    %v880 = vadd.f32 %v785, %v871
    %v881 = vadd.f32 %v786, %v873
    %v882 = vadd.f32 %v787, %v876
    %v883 = vadd.f32 %v788, %v878
    %v885 = vunpack.c.l.b16 %v199
    %v886 = vpack.c.b16 %v885, %v885
    %v889 = vsel %vm212, %v198, %v886
    %s891 = scalar_lea.vmem [#allocation5], 448
    %v892 = vld [vmem:[%s891] sm:$0xf]
    %v893 = vld [vmem:[%s891 + $0x4] sm:$0xf]
    %v894 = vld [vmem:[%s891 + $0x8] sm:$0xf]
    %v895 = vld [vmem:[%s891 + $0xc] sm:$0xf]
    %v896 = vld [vmem:[%s891 + $0x10] sm:$0xf]
    %v897 = vld [vmem:[%s891 + $0x14] sm:$0xf]
    %v898 = vld [vmem:[%s891 + $0x18] sm:$0xf]
    %v899 = vld [vmem:[%s891 + $0x1c] sm:$0xf]
    %v900 = vld [vmem:[%s891 + $0x20] sm:$0xf]
    %v901 = vld [vmem:[%s891 + $0x24] sm:$0xf]
    %v902 = vld [vmem:[%s891 + $0x28] sm:$0xf]
    %v903 = vld [vmem:[%s891 + $0x2c] sm:$0xf]
    %v904 = vld [vmem:[%s891 + $0x30] sm:$0xf]
    %v905 = vld [vmem:[%s891 + $0x34] sm:$0xf]
    %v906 = vld [vmem:[%s891 + $0x38] sm:$0xf]
    %v907 = vld [vmem:[%s891 + $0x3c] sm:$0xf]
    %v924 = vunpack.c.l.b16 %v892
    %v925 = vunpack.c.l.b16 %v893
    %v926 = vunpack.c.l.b16 %v894
    %v927 = vunpack.c.l.b16 %v895
    %v928 = vunpack.c.l.b16 %v896
    %v929 = vunpack.c.l.b16 %v897
    %v930 = vunpack.c.l.b16 %v898
    %v931 = vunpack.c.l.b16 %v899
    %v932 = vunpack.c.l.b16 %v900
    %v933 = vunpack.c.l.b16 %v901
    %v934 = vunpack.c.l.b16 %v902
    %v935 = vunpack.c.l.b16 %v903
    %v936 = vunpack.c.l.b16 %v904
    %v937 = vunpack.c.l.b16 %v905
    %v938 = vunpack.c.l.b16 %v906
    %v939 = vunpack.c.l.b16 %v907
    %v940 = vpack.c.b16 %v925, %v924
    %v941 = vpack.c.b16 %v927, %v926
    %v942 = vpack.c.b16 %v929, %v928
    %v943 = vpack.c.b16 %v931, %v930
    %v944 = vpack.c.b16 %v933, %v932
    %v945 = vpack.c.b16 %v935, %v934
    %v946 = vpack.c.b16 %v937, %v936
    %v947 = vpack.c.b16 %v939, %v938
    %956 = vmatpush.bf16.msra.mxu0 %v947
    %957 = vmatpush.bf16.msra.mxu0 %v946
    %958 = vmatpush.bf16.msra.mxu0 %v945
    %959 = vmatpush.bf16.msra.mxu0 %v944
    %960 = vmatpush.bf16.msra.mxu0 %v943
    %961 = vmatpush.bf16.msra.mxu0 %v942
    %962 = vmatpush.bf16.msra.mxu0 %v941
    %963 = vmatpush.bf16.msra.mxu0 %v940
    %964 = vmatmul.bf16.gmra.mxu0 %v604
    %v965 = vpop.f32.mrf.mxu0
    %v966 = vadd.f32 0.0, %v965
    %v967 = vpop.f32.mrf.mxu0
    %v968 = vadd.f32 0.0, %v967
    %969 = vmatmul.bf16.gmra.mxu0 %v889
    %v970 = vpop.f32.mrf.mxu0
    %v971 = vadd.f32 0.0, %v970
    %v972 = vpop.f32.mrf.mxu0
    %v973 = vadd.f32 0.0, %v972
    %974 = vdwg.mxu0
    %v975 = vadd.f32 %v880, %v966
    %v976 = vadd.f32 %v881, %v968
    %v977 = vadd.f32 %v882, %v971
    %v978 = vadd.f32 %v883, %v973
    %v980 = vunpack.c.l.b16 %v205
    %v981 = vpack.c.b16 %v980, %v980
    %v984 = vsel %vm212, %v199, %v981
    %s986 = scalar_lea.vmem [#allocation5], 512
    %v987 = vld [vmem:[%s986] sm:$0xf]
    %v988 = vld [vmem:[%s986 + $0x4] sm:$0xf]
    %v989 = vld [vmem:[%s986 + $0x8] sm:$0xf]
    %v990 = vld [vmem:[%s986 + $0xc] sm:$0xf]
    %v991 = vld [vmem:[%s986 + $0x10] sm:$0xf]
    %v992 = vld [vmem:[%s986 + $0x14] sm:$0xf]
    %v993 = vld [vmem:[%s986 + $0x18] sm:$0xf]
    %v994 = vld [vmem:[%s986 + $0x1c] sm:$0xf]
    %v995 = vld [vmem:[%s986 + $0x20] sm:$0xf]
    %v996 = vld [vmem:[%s986 + $0x24] sm:$0xf]
    %v997 = vld [vmem:[%s986 + $0x28] sm:$0xf]
    %v998 = vld [vmem:[%s986 + $0x2c] sm:$0xf]
    %v999 = vld [vmem:[%s986 + $0x30] sm:$0xf]
    %v1000 = vld [vmem:[%s986 + $0x34] sm:$0xf]
    %v1001 = vld [vmem:[%s986 + $0x38] sm:$0xf]
    %v1002 = vld [vmem:[%s986 + $0x3c] sm:$0xf]
    %v1019 = vunpack.c.l.b16 %v987
    %v1020 = vunpack.c.l.b16 %v988
    %v1021 = vunpack.c.l.b16 %v989
    %v1022 = vunpack.c.l.b16 %v990
    %v1023 = vunpack.c.l.b16 %v991
    %v1024 = vunpack.c.l.b16 %v992
    %v1025 = vunpack.c.l.b16 %v993
    %v1026 = vunpack.c.l.b16 %v994
    %v1027 = vunpack.c.l.b16 %v995
    %v1028 = vunpack.c.l.b16 %v996
    %v1029 = vunpack.c.l.b16 %v997
    %v1030 = vunpack.c.l.b16 %v998
    %v1031 = vunpack.c.l.b16 %v999
    %v1032 = vunpack.c.l.b16 %v1000
    %v1033 = vunpack.c.l.b16 %v1001
    %v1034 = vunpack.c.l.b16 %v1002
    %v1035 = vpack.c.b16 %v1020, %v1019
    %v1036 = vpack.c.b16 %v1022, %v1021
    %v1037 = vpack.c.b16 %v1024, %v1023
    %v1038 = vpack.c.b16 %v1026, %v1025
    %v1039 = vpack.c.b16 %v1028, %v1027
    %v1040 = vpack.c.b16 %v1030, %v1029
    %v1041 = vpack.c.b16 %v1032, %v1031
    %v1042 = vpack.c.b16 %v1034, %v1033
    %1051 = vmatpush.bf16.msra.mxu0 %v1042
    %1052 = vmatpush.bf16.msra.mxu0 %v1041
    %1053 = vmatpush.bf16.msra.mxu0 %v1040
    %1054 = vmatpush.bf16.msra.mxu0 %v1039
    %1055 = vmatpush.bf16.msra.mxu0 %v1038
    %1056 = vmatpush.bf16.msra.mxu0 %v1037
    %1057 = vmatpush.bf16.msra.mxu0 %v1036
    %1058 = vmatpush.bf16.msra.mxu0 %v1035
    %1059 = vmatmul.bf16.gmra.mxu0 %v699
    %v1060 = vpop.f32.mrf.mxu0
    %v1061 = vadd.f32 0.0, %v1060
    %v1062 = vpop.f32.mrf.mxu0
    %v1063 = vadd.f32 0.0, %v1062
    %1064 = vmatmul.bf16.gmra.mxu0 %v984
    %v1065 = vpop.f32.mrf.mxu0
    %v1066 = vadd.f32 0.0, %v1065
    %v1067 = vpop.f32.mrf.mxu0
    %v1068 = vadd.f32 0.0, %v1067
    %1069 = vdwg.mxu0
    %v1070 = vadd.f32 %v975, %v1061
    %v1071 = vadd.f32 %v976, %v1063
    %v1072 = vadd.f32 %v977, %v1066
    %v1073 = vadd.f32 %v978, %v1068
    %v1074 = vld [vmem:[%s2] sm:$0x1]
    %v1076 = vperm.slane %v1074, 0
    %v1078 = vmul.f32 %v1070, %v1076
    %v1079 = vmul.f32 %v1071, %v1076
    %v1080 = vmul.f32 %v1072, %v1076
    %v1081 = vmul.f32 %v1073, %v1076
    %v1082 = vld [vmem:[%s3] sm:$0x1]
    %v1084 = vperm.slane %v1082, 0
    %v1086 = vadd.f32 %v1078, %v1084
    %v1087 = vadd.f32 %v1079, %v1084
    %v1088 = vadd.f32 %v1080, %v1084
    %v1089 = vadd.f32 %v1081, %v1084
    %vm1090 = vcmp.ge.f32.partialorder %v1086, 0.0
    %vm1091 = vcmp.ge.f32.partialorder %v1087, 0.0
    %vm1092 = vcmp.ge.f32.partialorder %v1088, 0.0
    %vm1093 = vcmp.ge.f32.partialorder %v1089, 0.0
    %v1094 = vmul.f32 %v1086, 0.01
    %v1095 = vmul.f32 %v1087, 0.01
    %v1096 = vmul.f32 %v1088, 0.01
    %v1097 = vmul.f32 %v1089, 0.01
    %v1098 = vsel %vm1090, %v1086, %v1094
    %v1099 = vsel %vm1091, %v1087, %v1095
    %v1100 = vsel %vm1092, %v1088, %v1096
    %v1101 = vsel %vm1093, %v1089, %v1097
    %1102 = vst [vmem:[#allocation7] sm:$0xff] %v1098
    %1103 = vst [vmem:[#allocation7 + $0x8] sm:$0xff] %v1099
    %1104 = vst [vmem:[#allocation7 + $0x10] sm:$0xff] %v1100
    %1105 = vst [vmem:[#allocation7 + $0x18] sm:$0xff] %v1101
    // Predicated region
    $region26: #{tpu_custom_call.1} parent=1 // pred_check
      _
    $region27: #{tpu_custom_call.1} parent=1 // pred_check_branch
      %1107 = sbr.rel (0) target = $region29
    $region28: #{tpu_custom_call.1} parent=1 // pred_region
      %1109 = vsyncadd [#allocation4], 0
      %s1110 = sshll.u32 [#allocation7], 4
      %s1111 = int_to_ptr.vmem [resolvable:$true] %s1110
      %s1112 = sshll.u32 %s4, 4
      %s1113 = int_to_ptr.hbm [resolvable:$true] %s1112
      %1118 = dma.vmem_to_hbm [thread:$0]  %s1111, 512, %s1113, [#allocation4], 128, 128, 8
    $region29: #{tpu_custom_call.1} parent=1 // pred_fallthru
      _
    // Predicated region
    $region30: #{tpu_custom_call.1} parent=1 // pred_check
      _
    $region31: #{tpu_custom_call.1} parent=1 // pred_check_branch
      %1120 = sbr.rel (0) target = $region33
    $region32: #{tpu_custom_call.1} parent=1 // pred_region
      %1122 = dma.done [#allocation4], 512
    $region33: #{tpu_custom_call.1} parent=1 // pred_fallthru
      _
    %1123 = vsyncpa [#allocation3], 1
    %1124 = vsyncpa [#allocation6], 1
    %1125 = vsyncpa [#allocation4], 1

</llo_original>
